<compile_context>
chip_gen: v5e
topology: v5e:2x2
jax: 0.10.0
libtpu: 0.0.40
codegen_flags: <defaults>
</compile_context>

<pallas_src>
import functools
from math import sqrt

import jax
import jax.numpy as jnp
from jax.experimental import pallas as pl
from jax.experimental.pallas import tpu as pltpu

LN_EPS = 1e-5
LANE = 128
ROW_ALIGN = 16            # multiple of 16 rows -> safe for f32 and bf16 tiles
DEFAULT_TILE_N = 2048     # sweep 2048-4096 on real edge counts


def _round_up(x, m):
    return ((x + m - 1) // m) * m


def _pick_vmem_limit():
    """Generation-aware scoped-VMEM request (cap for v7x's 64 MiB per core)."""
    cap = None
    try:
        cap = getattr(pltpu.get_tpu_info(), "vmem_capacity_bytes", None)
    except Exception:
        cap = None
    if cap is None:
        cap = 64 * 1024 * 1024  # conservative default (v7x per-core VMEM)
    return int(min(cap * 3 // 4, 64 * 1024 * 1024))


def radial_mlp_kernel(x_ref,
                      w1_ref, b1_ref, g1_ref, be1_ref,
                      w2_ref, b2_ref, g2_ref, be2_ref,
                      w3_ref, b3_ref,
                      o_ref, *, use_tanh_gelu):
    mid = w2_ref.shape[0]
    # 1/mid column: row-moments via MXU (idle) instead of XLU lane reductions.
    inv_n = jnp.full((mid, 1), 1.0 / mid, jnp.float32)

    def layernorm(h, gamma, beta):
        mu = jnp.dot(h, inv_n, preferred_element_type=jnp.float32)        # (tn,1)
        ex2 = jnp.dot(h * h, inv_n, preferred_element_type=jnp.float32)   # (tn,1)
        var = ex2 - mu * mu
        return (h - mu) * jax.lax.rsqrt(var + LN_EPS) * gamma + beta

    def gelu(h):
        if use_tanh_gelu:
            # tanh approximation -> EUP slot (separate from VPU).
            c = 0.7978845608028654  # sqrt(2/pi)
            return 0.5 * h * (1.0 + jnp.tanh(c * (h + 0.044715 * (h * h * h))))
        # exact erf (PyTorch nn.GELU() default) -> VPU polynomial.
        return 0.5 * h * (1.0 + jax.lax.erf(h * 0.7071067811865476))

    def mm(a, w_ref, b_ref):
        # Cast the activation operand to the weight dtype (bf16 in the fast
        # config) — accumulate in f32 on the MXU either way.
        return (jnp.dot(a.astype(w_ref.dtype), w_ref[...],
                        preferred_element_type=jnp.float32)
                + b_ref[...].astype(jnp.float32))

    x = x_ref[...].astype(jnp.float32)

    h = gelu(layernorm(mm(x, w1_ref, b1_ref), g1_ref[...], be1_ref[...]))
    h = gelu(layernorm(mm(h, w2_ref, b2_ref), g2_ref[...], be2_ref[...]))
    y = mm(h, w3_ref, b3_ref)

    o_ref[...] = y.astype(o_ref.dtype)


def radial_func_forward(x, params, *, num_freq, in_dim, out_dim,
                        tile_n=DEFAULT_TILE_N, use_tanh_gelu=True,
                        matmul_dtype=jnp.bfloat16):
    """x: (..., edge_dim + 1).  Returns (..., out_dim, 1, in_dim, 1, num_freq)."""
    (w1, b1, g1, be1, w2, b2, g2, be2, w3, b3) = params
    batch_shape = x.shape[:-1]
    d_in = x.shape[-1]
    n = 1
    for s in batch_shape:
        n *= s
    x2 = x.reshape(n, d_in)

    mid_dim = w1.shape[1]
    out_total = w3.shape[1]

    # --- lane-dense output: zero-pad w3/b3 columns to a multiple of 128 ---
    out_pad = _round_up(out_total, LANE)
    if out_pad != out_total:
        w3p = jnp.pad(w3, ((0, 0), (0, out_pad - out_total)))
        b3p = jnp.pad(b3, ((0, 0), (0, out_pad - out_total)))
    else:
        w3p, b3p = w3, b3

    # --- bf16 matmul operands (weights cast once, outside the kernel) ---
    if matmul_dtype is not None:
        w1c = w1.astype(matmul_dtype)
        w2c = w2.astype(matmul_dtype)
        w3c = w3p.astype(matmul_dtype)
    else:
        w1c, w2c, w3c = w1, w2, w3p

    # --- row tiling: 16-row aligned (bf16-safe), padded N, >=2 grid steps ---
    tn = min(tile_n, _round_up(max(n, 1), ROW_ALIGN))
    tn = _round_up(tn, ROW_ALIGN)
    n_padded = _round_up(max(n, 1), tn)
    if n_padded // tn < 2 and tn >= 2 * ROW_ALIGN and n > ROW_ALIGN:
        # Keep at least 2 grid steps so v7x's second TensorCore gets work.
        tn = _round_up(tn // 2, ROW_ALIGN)
        n_padded = _round_up(n, tn)
    if n_padded != n:
        x2 = jnp.pad(x2, ((0, n_padded - n), (0, 0)))
    grid = (n_padded // tn,)

    def moving_spec(shape):
        return pl.BlockSpec(shape, lambda i: (i, 0))

    def resident_spec(shape):
        return pl.BlockSpec(shape, lambda i: (0, 0))

    itemsize = jnp.dtype(x.dtype).itemsize
    w_itemsize = jnp.dtype(w1c.dtype).itemsize
    weight_bytes = (w_itemsize * (d_in * mid_dim + mid_dim * mid_dim
                                  + mid_dim * out_pad)
                    + 4 * (6 * mid_dim + out_pad))
    cost = pl.CostEstimate(
        flops=2 * n_padded * (d_in * mid_dim + mid_dim * mid_dim
                              + mid_dim * out_pad + 4 * mid_dim),
        transcendentals=2 * n_padded * mid_dim,
        bytes_accessed=n_padded * (d_in + out_pad) * itemsize + weight_bytes,
    )

    kernel = functools.partial(radial_mlp_kernel, use_tanh_gelu=use_tanh_gelu)

    y = pl.pallas_call(
        kernel,
        out_shape=jax.ShapeDtypeStruct((n_padded, out_pad), x.dtype),
        grid=grid,
        in_specs=[
            moving_spec((tn, d_in)),
            resident_spec((d_in, mid_dim)), resident_spec((1, mid_dim)),
            resident_spec((1, mid_dim)), resident_spec((1, mid_dim)),
            resident_spec((mid_dim, mid_dim)), resident_spec((1, mid_dim)),
            resident_spec((1, mid_dim)), resident_spec((1, mid_dim)),
            resident_spec((mid_dim, out_pad)), resident_spec((1, out_pad)),
        ],
        out_specs=moving_spec((tn, out_pad)),
        compiler_params=pltpu.CompilerParams(
            dimension_semantics=("parallel",),
            vmem_limit_bytes=_pick_vmem_limit(),
        ),
        cost_estimate=cost,
    )(x2, w1c, b1, g1, be1, w2c, b2, g2, be2, w3c, b3p)

    # TODO(synk): fuse this de-pad slice + the downstream basis-contraction
    # einsum (PairwiseConv) into the kernel to avoid re-reading the padded slab.
    y = y[:n, :out_total]
    y = y.reshape(batch_shape + (out_dim, in_dim, num_freq))
    y = y[..., :, None, :, None, :]   # '... (o i f) -> ... o () i () f'
    return y


def init_params(key, edge_dim, mid_dim, num_freq, in_dim, out_dim):
    d_in = edge_dim + 1
    out_total = num_freq * in_dim * out_dim
    ks = jax.random.split(key, 6)

    def linear(kw, kb, fan_in, fan_out):
        bound = 1.0 / sqrt(fan_in)
        w = jax.random.uniform(kw, (fan_in, fan_out), jnp.float32, -bound, bound)
        b = jax.random.uniform(kb, (1, fan_out), jnp.float32, -bound, bound)
        return w, b

    w1, b1 = linear(ks[0], ks[1], d_in, mid_dim)
    w2, b2 = linear(ks[2], ks[3], mid_dim, mid_dim)
    w3, b3 = linear(ks[4], ks[5], mid_dim, out_total)
    g1 = jnp.ones((1, mid_dim), jnp.float32)
    be1 = jnp.zeros((1, mid_dim), jnp.float32)
    g2 = jnp.ones((1, mid_dim), jnp.float32)
    be2 = jnp.zeros((1, mid_dim), jnp.float32)
    return (w1, b1, g1, be1, w2, b2, g2, be2, w3, b3)


def _layernorm_ref(h, gamma, beta):
    mu = jnp.mean(h, axis=-1, keepdims=True)
    var = jnp.mean((h - mu) ** 2, axis=-1, keepdims=True)
    return (h - mu) * jax.lax.rsqrt(var + LN_EPS) * gamma + beta


def reference_forward(x, params, *, num_freq, in_dim, out_dim,
                      use_tanh_gelu=False):
    (w1, b1, g1, be1, w2, b2, g2, be2, w3, b3) = params
    act = functools.partial(jax.nn.gelu, approximate=use_tanh_gelu)
    h = act(_layernorm_ref(x @ w1 + b1, g1, be1))
    h = act(_layernorm_ref(h @ w2 + b2, g2, be2))
    y = h @ w3 + b3
    y = y.reshape(x.shape[:-1] + (out_dim, in_dim, num_freq))
    return y[..., :, None, :, None, :]


if __name__ == "__main__":
    # Small, module-consistent shapes: edge features are (b, m, n, edge_dim+1).
    num_freq, in_dim, out_dim = 3, 4, 4          # -> out_total = 48 (padded to 128)
    edge_dim, mid_dim = 7, 128
    batch_shape = (2, 7, 9)                      # 126 edges -> exercises row padding

    key = jax.random.PRNGKey(0)
    kx, kp = jax.random.split(key)
    x = jax.random.normal(kx, batch_shape + (edge_dim + 1,), jnp.float32)
    params = init_params(kp, edge_dim, mid_dim, num_freq, in_dim, out_dim)
    expected_shape = batch_shape + (out_dim, 1, in_dim, 1, num_freq)

    # 1) Strict-parity config (f32 matmuls, exact-erf GELU) vs f32 reference.
    out_exact = radial_func_forward(
        x, params, num_freq=num_freq, in_dim=in_dim, out_dim=out_dim,
        tile_n=64, use_tanh_gelu=False, matmul_dtype=None)
    out_exact = jax.block_until_ready(out_exact)
    ref_exact = reference_forward(x, params, num_freq=num_freq, in_dim=in_dim,
                                  out_dim=out_dim, use_tanh_gelu=False)
    assert out_exact.shape == expected_shape, out_exact.shape
    assert jnp.allclose(out_exact, ref_exact, atol=1e-4, rtol=1e-4)

    # 2) Fast production config (defaults: tanh GELU on EUP, bf16 matmul
    #    operands, large tiles).  Compared to an f32 reference using the same
    #    GELU approximation; tolerance covers the bf16-mantissa delta.
    out_fast = radial_func_forward(
        x, params, num_freq=num_freq, in_dim=in_dim, out_dim=out_dim)
    out_fast = jax.block_until_ready(out_fast)
    ref_fast = reference_forward(x, params, num_freq=num_freq, in_dim=in_dim,
                                 out_dim=out_dim, use_tanh_gelu=True)
    assert out_fast.shape == expected_shape, out_fast.shape
    assert jnp.allclose(out_fast, ref_fast, atol=5e-2, rtol=5e-2)

    print("KERNEL_OK")
</pallas_src>

<mosaic_0001>
module attributes {stable_mosaic.version = 11 : i64} {
  func.func @radial_mlp_kernel(%arg0: i32, %arg1: memref<64x8xf32, #tpu.memory_space<vmem>>, %arg2: memref<8x128xf32, #tpu.memory_space<vmem>>, %arg3: memref<1x128xf32, #tpu.memory_space<vmem>>, %arg4: memref<1x128xf32, #tpu.memory_space<vmem>>, %arg5: memref<1x128xf32, #tpu.memory_space<vmem>>, %arg6: memref<128x128xf32, #tpu.memory_space<vmem>>, %arg7: memref<1x128xf32, #tpu.memory_space<vmem>>, %arg8: memref<1x128xf32, #tpu.memory_space<vmem>>, %arg9: memref<1x128xf32, #tpu.memory_space<vmem>>, %arg10: memref<128x128xf32, #tpu.memory_space<vmem>>, %arg11: memref<1x128xf32, #tpu.memory_space<vmem>>, %arg12: memref<64x128xf32, #tpu.memory_space<vmem>>) attributes {dimension_semantics = [#tpu.dimension_semantics<parallel>], iteration_bounds = array<i64: 2>, scalar_prefetch = 0 : i64, scratch_operands = 0 : i64, tpu.core_type = #tpu.core_type<tc>, window_params = [{transform_indices = @transform_0, window_bounds = array<i64: 64, 8>}, {pipeline_mode = #tpu.pipeline_mode<synchronous>, transform_indices = @transform_1, window_bounds = array<i64: 8, 128>}, {pipeline_mode = #tpu.pipeline_mode<synchronous>, transform_indices = @transform_2, window_bounds = array<i64: 1, 128>}, {pipeline_mode = #tpu.pipeline_mode<synchronous>, transform_indices = @transform_3, window_bounds = array<i64: 1, 128>}, {pipeline_mode = #tpu.pipeline_mode<synchronous>, transform_indices = @transform_4, window_bounds = array<i64: 1, 128>}, {pipeline_mode = #tpu.pipeline_mode<synchronous>, transform_indices = @transform_5, window_bounds = array<i64: 128, 128>}, {pipeline_mode = #tpu.pipeline_mode<synchronous>, transform_indices = @transform_6, window_bounds = array<i64: 1, 128>}, {pipeline_mode = #tpu.pipeline_mode<synchronous>, transform_indices = @transform_7, window_bounds = array<i64: 1, 128>}, {pipeline_mode = #tpu.pipeline_mode<synchronous>, transform_indices = @transform_8, window_bounds = array<i64: 1, 128>}, {pipeline_mode = #tpu.pipeline_mode<synchronous>, transform_indices = @transform_9, window_bounds = array<i64: 128, 128>}, {pipeline_mode = #tpu.pipeline_mode<synchronous>, transform_indices = @transform_10, window_bounds = array<i64: 1, 128>}, {transform_indices = @transform_11, window_bounds = array<i64: 64, 128>}]} {
    %cst = arith.constant 7.812500e-03 : f32
    %0 = vector.broadcast %cst : f32 to vector<128x1xf32>
    %c0 = arith.constant 0 : index
    %c0_0 = arith.constant 0 : index
    %1 = vector.load %arg1[%c0, %c0_0] : memref<64x8xf32, #tpu.memory_space<vmem>>, vector<64x8xf32>
    %c0_1 = arith.constant 0 : index
    %c0_2 = arith.constant 0 : index
    %2 = vector.load %arg2[%c0_1, %c0_2] : memref<8x128xf32, #tpu.memory_space<vmem>>, vector<8x128xf32>
    %cst_3 = arith.constant dense<0.000000e+00> : vector<64x128xf32>
    %3 = tpu.matmul %1, %2, %cst_3 {dimension_numbers = #tpu.dot_dimension_numbers<[1], [0], [0], [1], [0, 0, 1, 1], [], []>} : vector<64x8xf32>, vector<8x128xf32>, vector<64x128xf32> -> vector<64x128xf32>
    %c0_4 = arith.constant 0 : index
    %c0_5 = arith.constant 0 : index
    %4 = vector.load %arg3[%c0_4, %c0_5] : memref<1x128xf32, #tpu.memory_space<vmem>>, vector<1x128xf32>
    %5 = vector.broadcast %4 : vector<1x128xf32> to vector<64x128xf32>
    %6 = arith.addf %3, %5 : vector<64x128xf32>
    %c0_6 = arith.constant 0 : index
    %c0_7 = arith.constant 0 : index
    %7 = vector.load %arg4[%c0_6, %c0_7] : memref<1x128xf32, #tpu.memory_space<vmem>>, vector<1x128xf32>
    %c0_8 = arith.constant 0 : index
    %c0_9 = arith.constant 0 : index
    %8 = vector.load %arg5[%c0_8, %c0_9] : memref<1x128xf32, #tpu.memory_space<vmem>>, vector<1x128xf32>
    %cst_10 = arith.constant dense<0.000000e+00> : vector<64x1xf32>
    %9 = tpu.matmul %6, %0, %cst_10 {dimension_numbers = #tpu.dot_dimension_numbers<[1], [0], [0], [1], [0, 0, 1, 1], [], []>} : vector<64x128xf32>, vector<128x1xf32>, vector<64x1xf32> -> vector<64x1xf32>
    %10 = arith.mulf %6, %6 : vector<64x128xf32>
    %cst_11 = arith.constant dense<0.000000e+00> : vector<64x1xf32>
    %11 = tpu.matmul %10, %0, %cst_11 {dimension_numbers = #tpu.dot_dimension_numbers<[1], [0], [0], [1], [0, 0, 1, 1], [], []>} : vector<64x128xf32>, vector<128x1xf32>, vector<64x1xf32> -> vector<64x1xf32>
    %12 = arith.mulf %9, %9 : vector<64x1xf32>
    %13 = arith.subf %11, %12 : vector<64x1xf32>
    %14 = vector.broadcast %9 : vector<64x1xf32> to vector<64x128xf32>
    %15 = arith.subf %6, %14 : vector<64x128xf32>
    %cst_12 = arith.constant 9.99999974E-6 : f32
    %16 = vector.broadcast %cst_12 : f32 to vector<64x1xf32>
    %17 = arith.addf %13, %16 : vector<64x1xf32>
    %18 = math.rsqrt %17 : vector<64x1xf32>
    %19 = vector.broadcast %18 : vector<64x1xf32> to vector<64x128xf32>
    %20 = arith.mulf %15, %19 : vector<64x128xf32>
    %21 = vector.broadcast %7 : vector<1x128xf32> to vector<64x128xf32>
    %22 = arith.mulf %20, %21 : vector<64x128xf32>
    %23 = vector.broadcast %8 : vector<1x128xf32> to vector<64x128xf32>
    %24 = arith.addf %22, %23 : vector<64x128xf32>
    %cst_13 = arith.constant 5.000000e-01 : f32
    %25 = vector.broadcast %cst_13 : f32 to vector<64x128xf32>
    %26 = arith.mulf %25, %24 : vector<64x128xf32>
    %cst_14 = arith.constant 0.707106769 : f32
    %27 = vector.broadcast %cst_14 : f32 to vector<64x128xf32>
    %28 = arith.mulf %24, %27 : vector<64x128xf32>
    %29 = math.erf %28 : vector<64x128xf32>
    %cst_15 = arith.constant 1.000000e+00 : f32
    %30 = vector.broadcast %cst_15 : f32 to vector<64x128xf32>
    %31 = arith.addf %30, %29 : vector<64x128xf32>
    %32 = arith.mulf %26, %31 : vector<64x128xf32>
    %c0_16 = arith.constant 0 : index
    %c0_17 = arith.constant 0 : index
    %33 = vector.load %arg6[%c0_16, %c0_17] : memref<128x128xf32, #tpu.memory_space<vmem>>, vector<128x128xf32>
    %cst_18 = arith.constant dense<0.000000e+00> : vector<64x128xf32>
    %34 = tpu.matmul %32, %33, %cst_18 {dimension_numbers = #tpu.dot_dimension_numbers<[1], [0], [0], [1], [0, 0, 1, 1], [], []>} : vector<64x128xf32>, vector<128x128xf32>, vector<64x128xf32> -> vector<64x128xf32>
    %c0_19 = arith.constant 0 : index
    %c0_20 = arith.constant 0 : index
    %35 = vector.load %arg7[%c0_19, %c0_20] : memref<1x128xf32, #tpu.memory_space<vmem>>, vector<1x128xf32>
    %36 = vector.broadcast %35 : vector<1x128xf32> to vector<64x128xf32>
    %37 = arith.addf %34, %36 : vector<64x128xf32>
    %c0_21 = arith.constant 0 : index
    %c0_22 = arith.constant 0 : index
    %38 = vector.load %arg8[%c0_21, %c0_22] : memref<1x128xf32, #tpu.memory_space<vmem>>, vector<1x128xf32>
    %c0_23 = arith.constant 0 : index
    %c0_24 = arith.constant 0 : index
    %39 = vector.load %arg9[%c0_23, %c0_24] : memref<1x128xf32, #tpu.memory_space<vmem>>, vector<1x128xf32>
    %cst_25 = arith.constant dense<0.000000e+00> : vector<64x1xf32>
    %40 = tpu.matmul %37, %0, %cst_25 {dimension_numbers = #tpu.dot_dimension_numbers<[1], [0], [0], [1], [0, 0, 1, 1], [], []>} : vector<64x128xf32>, vector<128x1xf32>, vector<64x1xf32> -> vector<64x1xf32>
    %41 = arith.mulf %37, %37 : vector<64x128xf32>
    %cst_26 = arith.constant dense<0.000000e+00> : vector<64x1xf32>
    %42 = tpu.matmul %41, %0, %cst_26 {dimension_numbers = #tpu.dot_dimension_numbers<[1], [0], [0], [1], [0, 0, 1, 1], [], []>} : vector<64x128xf32>, vector<128x1xf32>, vector<64x1xf32> -> vector<64x1xf32>
    %43 = arith.mulf %40, %40 : vector<64x1xf32>
    %44 = arith.subf %42, %43 : vector<64x1xf32>
    %45 = vector.broadcast %40 : vector<64x1xf32> to vector<64x128xf32>
    %46 = arith.subf %37, %45 : vector<64x128xf32>
    %cst_27 = arith.constant 9.99999974E-6 : f32
    %47 = vector.broadcast %cst_27 : f32 to vector<64x1xf32>
    %48 = arith.addf %44, %47 : vector<64x1xf32>
    %49 = math.rsqrt %48 : vector<64x1xf32>
    %50 = vector.broadcast %49 : vector<64x1xf32> to vector<64x128xf32>
    %51 = arith.mulf %46, %50 : vector<64x128xf32>
    %52 = vector.broadcast %38 : vector<1x128xf32> to vector<64x128xf32>
    %53 = arith.mulf %51, %52 : vector<64x128xf32>
    %54 = vector.broadcast %39 : vector<1x128xf32> to vector<64x128xf32>
    %55 = arith.addf %53, %54 : vector<64x128xf32>
    %cst_28 = arith.constant 5.000000e-01 : f32
    %56 = vector.broadcast %cst_28 : f32 to vector<64x128xf32>
    %57 = arith.mulf %56, %55 : vector<64x128xf32>
    %cst_29 = arith.constant 0.707106769 : f32
    %58 = vector.broadcast %cst_29 : f32 to vector<64x128xf32>
    %59 = arith.mulf %55, %58 : vector<64x128xf32>
    %60 = math.erf %59 : vector<64x128xf32>
    %cst_30 = arith.constant 1.000000e+00 : f32
    %61 = vector.broadcast %cst_30 : f32 to vector<64x128xf32>
    %62 = arith.addf %61, %60 : vector<64x128xf32>
    %63 = arith.mulf %57, %62 : vector<64x128xf32>
    %c0_31 = arith.constant 0 : index
    %c0_32 = arith.constant 0 : index
    %64 = vector.load %arg10[%c0_31, %c0_32] : memref<128x128xf32, #tpu.memory_space<vmem>>, vector<128x128xf32>
    %cst_33 = arith.constant dense<0.000000e+00> : vector<64x128xf32>
    %65 = tpu.matmul %63, %64, %cst_33 {dimension_numbers = #tpu.dot_dimension_numbers<[1], [0], [0], [1], [0, 0, 1, 1], [], []>} : vector<64x128xf32>, vector<128x128xf32>, vector<64x128xf32> -> vector<64x128xf32>
    %c0_34 = arith.constant 0 : index
    %c0_35 = arith.constant 0 : index
    %66 = vector.load %arg11[%c0_34, %c0_35] : memref<1x128xf32, #tpu.memory_space<vmem>>, vector<1x128xf32>
    %67 = vector.broadcast %66 : vector<1x128xf32> to vector<64x128xf32>
    %68 = arith.addf %65, %67 : vector<64x128xf32>
    %c0_36 = arith.constant 0 : index
    %c0_37 = arith.constant 0 : index
    %69 = vector.load %arg12[%c0_36, %c0_37] : memref<64x128xf32, #tpu.memory_space<vmem>>, vector<64x128xf32>
    tpu.vector_store %arg12[%c0_36, %c0_37], %68 {strides = array<i32>} : memref<64x128xf32, #tpu.memory_space<vmem>>, vector<64x128xf32>,
    return
  }
  func.func @transform_0(%arg0: i32) -> (i32, i32) {
    %c0_i32 = arith.constant 0 : i32
    %c0_i32_0 = arith.constant 0 : i32
    return %arg0, %c0_i32 : i32, i32
  }
  func.func @transform_1(%arg0: i32) -> (i32, i32) {
    %c0_i32 = arith.constant 0 : i32
    %c0_i32_0 = arith.constant 0 : i32
    %c0_i32_1 = arith.constant 0 : i32
    return %c0_i32, %c0_i32_0 : i32, i32
  }
  func.func @transform_2(%arg0: i32) -> (i32, i32) {
    %c0_i32 = arith.constant 0 : i32
    %c0_i32_0 = arith.constant 0 : i32
    %c0_i32_1 = arith.constant 0 : i32
    return %c0_i32, %c0_i32_0 : i32, i32
  }
  func.func @transform_3(%arg0: i32) -> (i32, i32) {
    %c0_i32 = arith.constant 0 : i32
    %c0_i32_0 = arith.constant 0 : i32
    %c0_i32_1 = arith.constant 0 : i32
    return %c0_i32, %c0_i32_0 : i32, i32
  }
  func.func @transform_4(%arg0: i32) -> (i32, i32) {
    %c0_i32 = arith.constant 0 : i32
    %c0_i32_0 = arith.constant 0 : i32
    %c0_i32_1 = arith.constant 0 : i32
    return %c0_i32, %c0_i32_0 : i32, i32
  }
  func.func @transform_5(%arg0: i32) -> (i32, i32) {
    %c0_i32 = arith.constant 0 : i32
    %c0_i32_0 = arith.constant 0 : i32
    %c0_i32_1 = arith.constant 0 : i32
    return %c0_i32, %c0_i32_0 : i32, i32
  }
  func.func @transform_6(%arg0: i32) -> (i32, i32) {
    %c0_i32 = arith.constant 0 : i32
    %c0_i32_0 = arith.constant 0 : i32
    %c0_i32_1 = arith.constant 0 : i32
    return %c0_i32, %c0_i32_0 : i32, i32
  }
  func.func @transform_7(%arg0: i32) -> (i32, i32) {
    %c0_i32 = arith.constant 0 : i32
    %c0_i32_0 = arith.constant 0 : i32
    %c0_i32_1 = arith.constant 0 : i32
    return %c0_i32, %c0_i32_0 : i32, i32
  }
  func.func @transform_8(%arg0: i32) -> (i32, i32) {
    %c0_i32 = arith.constant 0 : i32
    %c0_i32_0 = arith.constant 0 : i32
    %c0_i32_1 = arith.constant 0 : i32
    return %c0_i32, %c0_i32_0 : i32, i32
  }
  func.func @transform_9(%arg0: i32) -> (i32, i32) {
    %c0_i32 = arith.constant 0 : i32
    %c0_i32_0 = arith.constant 0 : i32
    %c0_i32_1 = arith.constant 0 : i32
    return %c0_i32, %c0_i32_0 : i32, i32
  }
  func.func @transform_10(%arg0: i32) -> (i32, i32) {
    %c0_i32 = arith.constant 0 : i32
    %c0_i32_0 = arith.constant 0 : i32
    %c0_i32_1 = arith.constant 0 : i32
    return %c0_i32, %c0_i32_0 : i32, i32
  }
  func.func @transform_11(%arg0: i32) -> (i32, i32) {
    %c0_i32 = arith.constant 0 : i32
    %c0_i32_0 = arith.constant 0 : i32
    return %arg0, %c0_i32 : i32, i32
  }
}

</mosaic_0001>

<llo_original>
// kernel: tpu_custom_call.1
$region0: #{tpu_custom_call.1}
  #allocation0 [shape = 'u32[]', space=smem, size = 0x4, offset = 0x4, fixed_abs, tag = 'smem constant byte address 0x4 - core index']
  #allocation1 [shape = 'u32[72,128]{1,0:T(1,128)}', space=vmem, size = 0x9000, scoped, tag = 'internal scratch']
  %s0 = inlined_call_operand.vmem [shape: f32[128,8], index: 0, kind: input, shape index: {}]
  %s1 = inlined_call_operand.vmem [shape: f32[8,128], index: 1, kind: input, shape index: {}]
  %s2 = inlined_call_operand.vmem [shape: f32[1,128], index: 2, kind: input, shape index: {}]
  %s3 = inlined_call_operand.vmem [shape: f32[1,128], index: 3, kind: input, shape index: {}]
  %s4 = inlined_call_operand.vmem [shape: f32[1,128], index: 4, kind: input, shape index: {}]
  %s5 = inlined_call_operand.vmem [shape: f32[128,128], index: 5, kind: input, shape index: {}]
  %s6 = inlined_call_operand.vmem [shape: f32[1,128], index: 6, kind: input, shape index: {}]
  %s7 = inlined_call_operand.vmem [shape: f32[1,128], index: 7, kind: input, shape index: {}]
  %s8 = inlined_call_operand.vmem [shape: f32[1,128], index: 8, kind: input, shape index: {}]
  %s9 = inlined_call_operand.hbm [shape: f32[128,128], index: 9, kind: input, shape index: {}]
  %s10 = inlined_call_operand.vmem [shape: f32[1,128], index: 10, kind: input, shape index: {}]
  %s11 = inlined_call_operand.hbm [shape: f32[128,128], index: 11, kind: output, shape index: {}]
  %s12 = sld [smem:[#allocation0]]
  $region81: #{tpu_custom_call.1} parent=0
    _
  %s14 = ssub.s32 1, %s12
  %s15 = scalar_select 0, %s14, %s12
  $region1: #{tpu_custom_call.1} parent=0
    #allocation2 [shape = 'u8[65536]{0}', space=vmem, size = 0x10000, scoped, tag = 'input window, operand 9, single buffered']
    #allocation3 [shape = 's32[2]{0}', space=sflag, size = 0x8, scoped, tag = 'scoped memory for tpu_custom_call.1']
    #allocation4 [shape = 's32[2]{0}', space=sflag, size = 0x8, scoped, tag = 'scoped memory for tpu_custom_call.1']
    #allocation5 [shape = 'u8[65536]{0}', space=vmem, size = 0x10000, scoped, tag = 'output window, operand 0']
    %16 = vsyncpa [#allocation3], 0
    %17 = vsyncpa [#allocation4], 0
    %s18 = scalar_lea.sflag [#allocation4], 1
    %19 = vsyncpa %s18, 0
    loop: start=0, step=1, limit=4
    $region2: #{tpu_custom_call.1} parent=1 // loop_pre_header
      _
    $region3: #{tpu_custom_call.1} parent=1 // loop_header
      %s21 = sphi 0, %s25
      %p22 = scmp.ge.s32.totalorder %s21, 4
      %s31 = sphi 0, %s33
      %s34 = sphi 0, %s31
      %s35 = sphi 0, %s34
      %s51 = sphi 0, %s35
      %s55 = sphi 0, %s55
      %s57 = sphi 0, %s55
      %s58 = sphi 0, %s57
      %s72 = sphi 0, %s58
      %s76 = sphi 0, %s76
      %s78 = sphi 0, %s76
      %s79 = sphi 0, %s78
      %s93 = sphi 0, %s79
      %s97 = sphi 0, %s97
      %s99 = sphi 0, %s97
      %s100 = sphi 0, %s99
      %s114 = sphi 0, %s100
      %s118 = sphi 0, %s118
      %s120 = sphi 0, %s118
      %s121 = sphi 0, %s120
      %s135 = sphi 0, %s121
      %s139 = sphi 0, %s139
      %s141 = sphi 0, %s139
      %s142 = sphi 0, %s141
      %s156 = sphi 0, %s142
      %s160 = sphi 0, %s160
      %s162 = sphi 0, %s160
      %s163 = sphi 0, %s162
      %s177 = sphi 0, %s163
      %s181 = sphi 0, %s181
      %s183 = sphi 0, %s181
      %s184 = sphi 0, %s183
      %s198 = sphi 0, %s184
      %s202 = sphi 0, %s202
      %s204 = sphi 0, %s202
      %s205 = sphi 0, %s204
      %s219 = sphi 0, %s205
      %s223 = sphi 0, %s223
      %s225 = sphi 0, %s223
      %s226 = sphi 0, %s225
      %s240 = sphi 0, %s226
      %s244 = sphi 0, %s244
      %s246 = sphi 0, %s244
      %s247 = sphi 0, %s246
      %s261 = sphi 0, %s247
      %s267 = sphi 0, %s269
      %s270 = sphi 0, %s267
      %s271 = sphi 0, %s270
      %s287 = sphi 0, %s271
    $region4: #{tpu_custom_call.1} parent=1 // loop_header_branch
      %24 = sbr.rel (%p22) target = $region8
    $region5: #{tpu_custom_call.1} parent=1 // loop_body
      %s26 = ssub.s32 %s21, 1
      %s27 = ssub.s32 %s21, 2
      %s28 = sadd.s32 %s21, 1
      %s29 = ssub.s32 %s21, %s28
      %p30 = scmp.eq.s32.totalorder %s29, 0
      %s32 = sadd.s32 %s31, 1
      %s33 = scalar_select %p30, %s31, %s32
      %p36 = pneg %p30
      %p37 = scmp.eq.s32.totalorder %s21, 1
      %p38 = por %p36, %p37
      %p39 = scmp.ne.s32.totalorder %s31, %s34
      %p40 = scmp.eq.s32.totalorder %s21, 0
      %p41 = por %p39, %p40
      %p42 = scmp.ne.s32.totalorder %s31, %s34
      %p43 = scmp.eq.s32.totalorder %s26, 1
      %p44 = por %p42, %p43
      %p45 = scmp.ne.s32.totalorder %s34, %s35
      %p46 = scmp.eq.s32.totalorder %s26, 0
      %p47 = por %p45, %p46
      %p48 = scmp.ne.s32.totalorder %s34, %s35
      %p49 = scmp.eq.s32.totalorder %s27, 1
      %p50 = por %p48, %p49
      %p52 = scmp.ne.s32.totalorder %s35, %s51
      %p53 = scmp.eq.s32.totalorder %s27, 0
      %p54 = por %p52, %p53
      %s56 = sadd.s32 %s55, 1
      %p59 = scmp.eq.s32.totalorder %s21, 1
      %p60 = scmp.ne.s32.totalorder %s55, %s57
      %p61 = scmp.eq.s32.totalorder %s21, 0
      %p62 = por %p60, %p61
      %p63 = scmp.ne.s32.totalorder %s55, %s57
      %p64 = scmp.eq.s32.totalorder %s26, 1
      %p65 = por %p63, %p64
      %p66 = scmp.ne.s32.totalorder %s57, %s58
      %p67 = scmp.eq.s32.totalorder %s26, 0
      %p68 = por %p66, %p67
      %p69 = scmp.ne.s32.totalorder %s57, %s58
      %p70 = scmp.eq.s32.totalorder %s27, 1
      %p71 = por %p69, %p70
      %p73 = scmp.ne.s32.totalorder %s58, %s72
      %p74 = scmp.eq.s32.totalorder %s27, 0
      %p75 = por %p73, %p74
      %s77 = sadd.s32 %s76, 1
      %p80 = scmp.eq.s32.totalorder %s21, 1
      %p81 = scmp.ne.s32.totalorder %s76, %s78
      %p82 = scmp.eq.s32.totalorder %s21, 0
      %p83 = por %p81, %p82
      %p84 = scmp.ne.s32.totalorder %s76, %s78
      %p85 = scmp.eq.s32.totalorder %s26, 1
      %p86 = por %p84, %p85
      %p87 = scmp.ne.s32.totalorder %s78, %s79
      %p88 = scmp.eq.s32.totalorder %s26, 0
      %p89 = por %p87, %p88
      %p90 = scmp.ne.s32.totalorder %s78, %s79
      %p91 = scmp.eq.s32.totalorder %s27, 1
      %p92 = por %p90, %p91
      %p94 = scmp.ne.s32.totalorder %s79, %s93
      %p95 = scmp.eq.s32.totalorder %s27, 0
      %p96 = por %p94, %p95
      %s98 = sadd.s32 %s97, 1
      %p101 = scmp.eq.s32.totalorder %s21, 1
      %p102 = scmp.ne.s32.totalorder %s97, %s99
      %p103 = scmp.eq.s32.totalorder %s21, 0
      %p104 = por %p102, %p103
      %p105 = scmp.ne.s32.totalorder %s97, %s99
      %p106 = scmp.eq.s32.totalorder %s26, 1
      %p107 = por %p105, %p106
      %p108 = scmp.ne.s32.totalorder %s99, %s100
      %p109 = scmp.eq.s32.totalorder %s26, 0
      %p110 = por %p108, %p109
      %p111 = scmp.ne.s32.totalorder %s99, %s100
      %p112 = scmp.eq.s32.totalorder %s27, 1
      %p113 = por %p111, %p112
      %p115 = scmp.ne.s32.totalorder %s100, %s114
      %p116 = scmp.eq.s32.totalorder %s27, 0
      %p117 = por %p115, %p116
      %s119 = sadd.s32 %s118, 1
      %p122 = scmp.eq.s32.totalorder %s21, 1
      %p123 = scmp.ne.s32.totalorder %s118, %s120
      %p124 = scmp.eq.s32.totalorder %s21, 0
      %p125 = por %p123, %p124
      %p126 = scmp.ne.s32.totalorder %s118, %s120
      %p127 = scmp.eq.s32.totalorder %s26, 1
      %p128 = por %p126, %p127
      %p129 = scmp.ne.s32.totalorder %s120, %s121
      %p130 = scmp.eq.s32.totalorder %s26, 0
      %p131 = por %p129, %p130
      %p132 = scmp.ne.s32.totalorder %s120, %s121
      %p133 = scmp.eq.s32.totalorder %s27, 1
      %p134 = por %p132, %p133
      %p136 = scmp.ne.s32.totalorder %s121, %s135
      %p137 = scmp.eq.s32.totalorder %s27, 0
      %p138 = por %p136, %p137
      %s140 = sadd.s32 %s139, 1
      %p143 = scmp.eq.s32.totalorder %s21, 1
      %p144 = scmp.ne.s32.totalorder %s139, %s141
      %p145 = scmp.eq.s32.totalorder %s21, 0
      %p146 = por %p144, %p145
      %p147 = scmp.ne.s32.totalorder %s139, %s141
      %p148 = scmp.eq.s32.totalorder %s26, 1
      %p149 = por %p147, %p148
      %p150 = scmp.ne.s32.totalorder %s141, %s142
      %p151 = scmp.eq.s32.totalorder %s26, 0
      %p152 = por %p150, %p151
      %p153 = scmp.ne.s32.totalorder %s141, %s142
      %p154 = scmp.eq.s32.totalorder %s27, 1
      %p155 = por %p153, %p154
      %p157 = scmp.ne.s32.totalorder %s142, %s156
      %p158 = scmp.eq.s32.totalorder %s27, 0
      %p159 = por %p157, %p158
      %s161 = sadd.s32 %s160, 1
      %p164 = scmp.eq.s32.totalorder %s21, 1
      %p165 = scmp.ne.s32.totalorder %s160, %s162
      %p166 = scmp.eq.s32.totalorder %s21, 0
      %p167 = por %p165, %p166
      %p168 = scmp.ne.s32.totalorder %s160, %s162
      %p169 = scmp.eq.s32.totalorder %s26, 1
      %p170 = por %p168, %p169
      %p171 = scmp.ne.s32.totalorder %s162, %s163
      %p172 = scmp.eq.s32.totalorder %s26, 0
      %p173 = por %p171, %p172
      %p174 = scmp.ne.s32.totalorder %s162, %s163
      %p175 = scmp.eq.s32.totalorder %s27, 1
      %p176 = por %p174, %p175
      %p178 = scmp.ne.s32.totalorder %s163, %s177
      %p179 = scmp.eq.s32.totalorder %s27, 0
      %p180 = por %p178, %p179
      %s182 = sadd.s32 %s181, 1
      %p185 = scmp.eq.s32.totalorder %s21, 1
      %p186 = scmp.ne.s32.totalorder %s181, %s183
      %p187 = scmp.eq.s32.totalorder %s21, 0
      %p188 = por %p186, %p187
      %p189 = scmp.ne.s32.totalorder %s181, %s183
      %p190 = scmp.eq.s32.totalorder %s26, 1
      %p191 = por %p189, %p190
      %p192 = scmp.ne.s32.totalorder %s183, %s184
      %p193 = scmp.eq.s32.totalorder %s26, 0
      %p194 = por %p192, %p193
      %p195 = scmp.ne.s32.totalorder %s183, %s184
      %p196 = scmp.eq.s32.totalorder %s27, 1
      %p197 = por %p195, %p196
      %p199 = scmp.ne.s32.totalorder %s184, %s198
      %p200 = scmp.eq.s32.totalorder %s27, 0
      %p201 = por %p199, %p200
      %s203 = sadd.s32 %s202, 1
      %p206 = scmp.eq.s32.totalorder %s21, 1
      %p207 = scmp.ne.s32.totalorder %s202, %s204
      %p208 = scmp.eq.s32.totalorder %s21, 0
      %p209 = por %p207, %p208
      %p210 = scmp.ne.s32.totalorder %s202, %s204
      %p211 = scmp.eq.s32.totalorder %s26, 1
      %p212 = por %p210, %p211
      %p213 = scmp.ne.s32.totalorder %s204, %s205
      %p214 = scmp.eq.s32.totalorder %s26, 0
      %p215 = por %p213, %p214
      %p216 = scmp.ne.s32.totalorder %s204, %s205
      %p217 = scmp.eq.s32.totalorder %s27, 1
      %p218 = por %p216, %p217
      %p220 = scmp.ne.s32.totalorder %s205, %s219
      %p221 = scmp.eq.s32.totalorder %s27, 0
      %p222 = por %p220, %p221
      %s224 = sadd.s32 %s223, 1
      %p227 = scmp.eq.s32.totalorder %s21, 1
      %p228 = scmp.ne.s32.totalorder %s223, %s225
      %p229 = scmp.eq.s32.totalorder %s21, 0
      %p230 = por %p228, %p229
      %p231 = scmp.ne.s32.totalorder %s223, %s225
      %p232 = scmp.eq.s32.totalorder %s26, 1
      %p233 = por %p231, %p232
      %p234 = scmp.ne.s32.totalorder %s225, %s226
      %p235 = scmp.eq.s32.totalorder %s26, 0
      %p236 = por %p234, %p235
      %p237 = scmp.ne.s32.totalorder %s225, %s226
      %p238 = scmp.eq.s32.totalorder %s27, 1
      %p239 = por %p237, %p238
      %p241 = scmp.ne.s32.totalorder %s226, %s240
      %p242 = scmp.eq.s32.totalorder %s27, 0
      %p243 = por %p241, %p242
      %s245 = sadd.s32 %s244, 1
      %p248 = scmp.eq.s32.totalorder %s21, 1
      %p249 = scmp.ne.s32.totalorder %s244, %s246
      %p250 = scmp.eq.s32.totalorder %s21, 0
      %p251 = por %p249, %p250
      %p252 = scmp.ne.s32.totalorder %s244, %s246
      %p253 = scmp.eq.s32.totalorder %s26, 1
      %p254 = por %p252, %p253
      %p255 = scmp.ne.s32.totalorder %s246, %s247
      %p256 = scmp.eq.s32.totalorder %s26, 0
      %p257 = por %p255, %p256
      %p258 = scmp.ne.s32.totalorder %s246, %s247
      %p259 = scmp.eq.s32.totalorder %s27, 1
      %p260 = por %p258, %p259
      %p262 = scmp.ne.s32.totalorder %s247, %s261
      %p263 = scmp.eq.s32.totalorder %s27, 0
      %p264 = por %p262, %p263
      %s265 = ssub.s32 %s21, %s28
      %p266 = scmp.eq.s32.totalorder %s265, 0
      %s268 = sadd.s32 %s267, 1
      %s269 = scalar_select %p266, %s267, %s268
      %p272 = pneg %p266
      %p273 = scmp.eq.s32.totalorder %s21, 1
      %p274 = por %p272, %p273
      %p275 = scmp.ne.s32.totalorder %s267, %s270
      %p276 = scmp.eq.s32.totalorder %s21, 0
      %p277 = por %p275, %p276
      %p278 = scmp.ne.s32.totalorder %s267, %s270
      %p279 = scmp.eq.s32.totalorder %s26, 1
      %p280 = por %p278, %p279
      %p281 = scmp.ne.s32.totalorder %s270, %s271
      %p282 = scmp.eq.s32.totalorder %s26, 0
      %p283 = por %p281, %p282
      %p284 = scmp.ne.s32.totalorder %s270, %s271
      %p285 = scmp.eq.s32.totalorder %s27, 1
      %p286 = por %p284, %p285
      %p288 = scmp.ne.s32.totalorder %s271, %s287
      %p289 = scmp.eq.s32.totalorder %s27, 0
      %p290 = por %p288, %p289
      %p291 = scmp.le.s32.totalorder 1, %s21
      %p292 = scmp.lt.s32.totalorder %s21, 3
      %p293 = pnand %p291, %p292
      %p294 = pneg %p293
      // Predicated region
      $region9: #{tpu_custom_call.1} parent=5 // pred_check
        _
      $region10: #{tpu_custom_call.1} parent=5 // pred_check_branch
        %296 = sbr.rel (%p293) target = $region12
      $region11: #{tpu_custom_call.1} parent=5 // pred_region
        %s297 = ssub.s32 %s21, 1
        // Predicated region
        $region13: #{tpu_custom_call.1} parent=11 // pred_check
          %p298 = pneg %p68
        $region14: #{tpu_custom_call.1} parent=11 // pred_check_branch
          %300 = sbr.rel (%p298) target = $region16
        $region15: #{tpu_custom_call.1} parent=11 // pred_region
          _
        $region16: #{tpu_custom_call.1} parent=11 // pred_fallthru
          _
        // Predicated region
        $region17: #{tpu_custom_call.1} parent=11 // pred_check
          %p301 = pneg %p89
        $region18: #{tpu_custom_call.1} parent=11 // pred_check_branch
          %303 = sbr.rel (%p301) target = $region20
        $region19: #{tpu_custom_call.1} parent=11 // pred_region
          _
        $region20: #{tpu_custom_call.1} parent=11 // pred_fallthru
          _
        // Predicated region
        $region21: #{tpu_custom_call.1} parent=11 // pred_check
          %p304 = pneg %p110
        $region22: #{tpu_custom_call.1} parent=11 // pred_check_branch
          %306 = sbr.rel (%p304) target = $region24
        $region23: #{tpu_custom_call.1} parent=11 // pred_region
          _
        $region24: #{tpu_custom_call.1} parent=11 // pred_fallthru
          _
        // Predicated region
        $region25: #{tpu_custom_call.1} parent=11 // pred_check
          %p307 = pneg %p131
        $region26: #{tpu_custom_call.1} parent=11 // pred_check_branch
          %309 = sbr.rel (%p307) target = $region28
        $region27: #{tpu_custom_call.1} parent=11 // pred_region
          _
        $region28: #{tpu_custom_call.1} parent=11 // pred_fallthru
          _
        // Predicated region
        $region29: #{tpu_custom_call.1} parent=11 // pred_check
          %p310 = pneg %p152
        $region30: #{tpu_custom_call.1} parent=11 // pred_check_branch
          %312 = sbr.rel (%p310) target = $region32
        $region31: #{tpu_custom_call.1} parent=11 // pred_region
          _
        $region32: #{tpu_custom_call.1} parent=11 // pred_fallthru
          _
        // Predicated region
        $region33: #{tpu_custom_call.1} parent=11 // pred_check
          %p313 = pneg %p173
        $region34: #{tpu_custom_call.1} parent=11 // pred_check_branch
          %315 = sbr.rel (%p313) target = $region36
        $region35: #{tpu_custom_call.1} parent=11 // pred_region
          _
        $region36: #{tpu_custom_call.1} parent=11 // pred_fallthru
          _
        // Predicated region
        $region37: #{tpu_custom_call.1} parent=11 // pred_check
          %p316 = pneg %p194
        $region38: #{tpu_custom_call.1} parent=11 // pred_check_branch
          %318 = sbr.rel (%p316) target = $region40
        $region39: #{tpu_custom_call.1} parent=11 // pred_region
          _
        $region40: #{tpu_custom_call.1} parent=11 // pred_fallthru
          _
        // Predicated region
        $region41: #{tpu_custom_call.1} parent=11 // pred_check
          %p319 = pneg %p215
        $region42: #{tpu_custom_call.1} parent=11 // pred_check_branch
          %321 = sbr.rel (%p319) target = $region44
        $region43: #{tpu_custom_call.1} parent=11 // pred_region
          _
        $region44: #{tpu_custom_call.1} parent=11 // pred_fallthru
          _
        // Predicated region
        $region45: #{tpu_custom_call.1} parent=11 // pred_check
          %p322 = pneg %p236
        $region46: #{tpu_custom_call.1} parent=11 // pred_check_branch
          %324 = sbr.rel (%p322) target = $region48
        $region47: #{tpu_custom_call.1} parent=11 // pred_region
          %326 = vsyncadd [#allocation3], 0
          %s327 = sshll.u32 %s9, 4
          %s328 = int_to_ptr.hbm [resolvable:$true] %s327
          %s329 = sshll.u32 [#allocation2], 4
          %s330 = int_to_ptr.vmem [resolvable:$true] %s329
          %335 = dma.hbm_to_vmem [thread:$0]  %s328, 2048, %s330, [#allocation3], 128, 128, 8
        $region48: #{tpu_custom_call.1} parent=11 // pred_fallthru
          _
        // Predicated region
        $region49: #{tpu_custom_call.1} parent=11 // pred_check
          %p336 = pneg %p257
        $region50: #{tpu_custom_call.1} parent=11 // pred_check_branch
          %338 = sbr.rel (%p336) target = $region52
        $region51: #{tpu_custom_call.1} parent=11 // pred_region
          _
        $region52: #{tpu_custom_call.1} parent=11 // pred_fallthru
          _
      $region12: #{tpu_custom_call.1} parent=5 // pred_fallthru
        _
      %p339 = scmp.lt.s32.totalorder %s21, 2
      // Predicated region
      $region53: #{tpu_custom_call.1} parent=5 // pred_check
        %p340 = pneg %p339
      $region54: #{tpu_custom_call.1} parent=5 // pred_check_branch
        %342 = sbr.rel (%p340) target = $region56
      $region55: #{tpu_custom_call.1} parent=5 // pred_region
        // Predicated region
        $region57: #{tpu_custom_call.1} parent=55 // pred_check
          %p343 = pneg %p41
        $region58: #{tpu_custom_call.1} parent=55 // pred_check_branch
          %345 = sbr.rel (%p343) target = $region60
        $region59: #{tpu_custom_call.1} parent=55 // pred_region
          %s346 = smul.u32 8, %s21
          %p347 = scmp.lt.s32.totalorder %s346, 15
          %s348 = scalar_select %p347, %s346, 15
          %s349 = smul.addr %s348, 8
          %s350 = scalar_lea.vmem %s0, %s349
          %s351 = smul.u32 8, %s21
        $region60: #{tpu_custom_call.1} parent=55 // pred_fallthru
          _
      $region56: #{tpu_custom_call.1} parent=5 // pred_fallthru
        _
      %p352 = scmp.le.s32.totalorder 1, %s21
      %p353 = scmp.lt.s32.totalorder %s21, 3
      %p354 = pnand %p352, %p353
      %p355 = pneg %p354
      // Predicated region
      $region61: #{tpu_custom_call.1} parent=5 // pred_check
        _
      $region62: #{tpu_custom_call.1} parent=5 // pred_check_branch
        %357 = sbr.rel (%p354) target = $region64
      $region63: #{tpu_custom_call.1} parent=5 // pred_region
        %s358 = ssub.s32 %s21, 1
        // Predicated region
        $region65: #{tpu_custom_call.1} parent=63 // pred_check
          %p359 = pneg %p236
        $region66: #{tpu_custom_call.1} parent=63 // pred_check_branch
          %361 = sbr.rel (%p359) target = $region68
        $region67: #{tpu_custom_call.1} parent=63 // pred_region
          %363 = dma.done [#allocation3], 2048
        $region68: #{tpu_custom_call.1} parent=63 // pred_fallthru
          _
        %s364 = smul.u32 8, %s26
        %p365 = scmp.lt.s32.totalorder %s364, 15
        %s366 = scalar_select %p365, %s364, 15
        %s367 = smul.addr %s366, 8
        %s368 = scalar_lea.vmem %s0, %s367
        %p369 = pneg %p47
        %p370 = pneg %p44
        %p371 = pneg %p68
        %p372 = pneg %p65
        %p373 = pneg %p89
        %p374 = pneg %p86
        %p375 = pneg %p110
        %p376 = pneg %p107
        %p377 = pneg %p131
        %p378 = pneg %p128
        %p379 = pneg %p152
        %p380 = pneg %p149
        %p381 = pneg %p173
        %p382 = pneg %p170
        %p383 = pneg %p194
        %p384 = pneg %p191
        %p385 = pneg %p215
        %p386 = pneg %p212
        %p387 = pneg %p236
        %p388 = pneg %p233
        %p389 = pneg %p257
        %p390 = pneg %p254
        %p391 = pneg %p283
        %p392 = pneg %p280
        %s393 = sand.u32 %s270, 1
        %s394 = scalar_lea.sflag [#allocation4], %s393
        %s395 = sand.u32 %s270, 1
        %s396 = smul.addr %s395, 64
        %s397 = scalar_lea.vmem [#allocation5], %s396
        %s398 = smul.u32 8, %s26
        %p399 = scmp.lt.s32.totalorder %s398, 15
        %s400 = scalar_select %p399, %s398, 15
        %s401 = smul.addr %s400, 8
        %s402 = scalar_lea.vmem %s0, %s401
        %s403 = smul.u32 8, %s26
        %s404 = smul.u32 8, %s26
        %v405 = vld [vmem:[%s402] sm:$0xff]
        %v406 = vld [vmem:[%s402 + $0x8] sm:$0xff]
        %v407 = vld [vmem:[%s402 + $0x10] sm:$0xff]
        %v408 = vld [vmem:[%s402 + $0x18] sm:$0xff]
        %v409 = vld [vmem:[%s402 + $0x20] sm:$0xff]
        %v410 = vld [vmem:[%s402 + $0x28] sm:$0xff]
        %v411 = vld [vmem:[%s402 + $0x30] sm:$0xff]
        %v412 = vld [vmem:[%s402 + $0x38] sm:$0xff]
        %v413 = vld [vmem:[%s1] sm:$0xff]
        %v414 = vld [vmem:[%s2] sm:$0x1]
        %v416 = vperm.slane %v414, 0
        %vm418 = vcmask 64512
        %v420 = vsel %vm418, %v405, 0
        %v423 = vsel %vm418, %v406, 0
        %v426 = vsel %vm418, %v407, 0
        %v429 = vsel %vm418, %v408, 0
        %v432 = vsel %vm418, %v409, 0
        %v435 = vsel %vm418, %v410, 0
        %v438 = vsel %vm418, %v411, 0
        %v441 = vsel %vm418, %v412, 0
        %443 = vmatpush.msra.mxu0 0.0
        %444 = vmatpush.msra.mxu0 0.0
        %445 = vmatpush.msra.mxu0 0.0
        %446 = vmatpush.msra.mxu0 0.0
        %447 = vmatpush.msra.mxu0 0.0
        %448 = vmatpush.msra.mxu0 0.0
        %449 = vmatpush.msra.mxu0 0.0
        %450 = vmatpush.msra.mxu0 0.0
        %451 = vmatpush.msra.mxu0 0.0
        %452 = vmatpush.msra.mxu0 0.0
        %453 = vmatpush.msra.mxu0 0.0
        %454 = vmatpush.msra.mxu0 0.0
        %455 = vmatpush.msra.mxu0 0.0
        %456 = vmatpush.msra.mxu0 0.0
        %457 = vmatpush.msra.mxu0 0.0
        %458 = vmatpush.msra.mxu0 %v413
        %459 = vmatmul.f32.gmra.mxu0 %v420
        %v460 = vpop.f32.mrf.mxu0
        %v461 = vadd.f32 %v416, %v460
        %462 = vmatmul.f32.gmra.mxu0 %v423
        %v463 = vpop.f32.mrf.mxu0
        %v464 = vadd.f32 %v416, %v463
        %465 = vmatmul.f32.gmra.mxu0 %v426
        %v466 = vpop.f32.mrf.mxu0
        %v467 = vadd.f32 %v416, %v466
        %468 = vmatmul.f32.gmra.mxu0 %v429
        %v469 = vpop.f32.mrf.mxu0
        %v470 = vadd.f32 %v416, %v469
        %471 = vmatmul.f32.gmra.mxu0 %v432
        %v472 = vpop.f32.mrf.mxu0
        %v473 = vadd.f32 %v416, %v472
        %474 = vmatmul.f32.gmra.mxu0 %v435
        %v475 = vpop.f32.mrf.mxu0
        %v476 = vadd.f32 %v416, %v475
        %477 = vmatmul.f32.gmra.mxu0 %v438
        %v478 = vpop.f32.mrf.mxu0
        %v479 = vadd.f32 %v416, %v478
        %480 = vmatmul.f32.gmra.mxu0 %v441
        %v481 = vpop.f32.mrf.mxu0
        %v482 = vadd.f32 %v416, %v481
        %483 = vdwg.mxu0
        %v484 = vld [vmem:[%s3] sm:$0x1]
        %v485 = vld [vmem:[%s4] sm:$0x1]
        %486 = vmatpush.msra.mxu0 0.0078125
        %487 = vmatpush.msra.mxu0 0.0078125
        %488 = vmatpush.msra.mxu0 0.0078125
        %489 = vmatpush.msra.mxu0 0.0078125
        %490 = vmatpush.msra.mxu0 0.0078125
        %491 = vmatpush.msra.mxu0 0.0078125
        %492 = vmatpush.msra.mxu0 0.0078125
        %493 = vmatpush.msra.mxu0 0.0078125
        %494 = vmatpush.msra.mxu0 0.0078125
        %495 = vmatpush.msra.mxu0 0.0078125
        %496 = vmatpush.msra.mxu0 0.0078125
        %497 = vmatpush.msra.mxu0 0.0078125
        %498 = vmatpush.msra.mxu0 0.0078125
        %499 = vmatpush.msra.mxu0 0.0078125
        %500 = vmatpush.msra.mxu0 0.0078125
        %501 = vmatpush.msra.mxu0 0.0078125
        %502 = vmatmul.f32.gmra.mxu0 %v461
        %v503 = vpop.f32.mrf.mxu0
        %v504 = vadd.f32 0.0, %v503
        %505 = vmatmul.f32.gmra.mxu0 %v464
        %v506 = vpop.f32.mrf.mxu0
        %v507 = vadd.f32 0.0, %v506
        %508 = vmatmul.f32.gmra.mxu0 %v467
        %v509 = vpop.f32.mrf.mxu0
        %v510 = vadd.f32 0.0, %v509
        %511 = vmatmul.f32.gmra.mxu0 %v470
        %v512 = vpop.f32.mrf.mxu0
        %v513 = vadd.f32 0.0, %v512
        %514 = vmatmul.f32.gmra.mxu0 %v473
        %v515 = vpop.f32.mrf.mxu0
        %v516 = vadd.f32 0.0, %v515
        %517 = vmatmul.f32.gmra.mxu0 %v476
        %v518 = vpop.f32.mrf.mxu0
        %v519 = vadd.f32 0.0, %v518
        %520 = vmatmul.f32.gmra.mxu0 %v479
        %v521 = vpop.f32.mrf.mxu0
        %v522 = vadd.f32 0.0, %v521
        %523 = vmatmul.f32.gmra.mxu0 %v482
        %v524 = vpop.f32.mrf.mxu0
        %v525 = vadd.f32 0.0, %v524
        %526 = vdwg.mxu0
        %v527 = vmul.f32 %v461, %v461
        %v528 = vmul.f32 %v464, %v464
        %v529 = vmul.f32 %v467, %v467
        %v530 = vmul.f32 %v470, %v470
        %v531 = vmul.f32 %v473, %v473
        %v532 = vmul.f32 %v476, %v476
        %v533 = vmul.f32 %v479, %v479
        %v534 = vmul.f32 %v482, %v482
        %535 = vmatpush.msra.mxu0 0.0078125
        %536 = vmatpush.msra.mxu0 0.0078125
        %537 = vmatpush.msra.mxu0 0.0078125
        %538 = vmatpush.msra.mxu0 0.0078125
        %539 = vmatpush.msra.mxu0 0.0078125
        %540 = vmatpush.msra.mxu0 0.0078125
        %541 = vmatpush.msra.mxu0 0.0078125
        %542 = vmatpush.msra.mxu0 0.0078125
        %543 = vmatpush.msra.mxu0 0.0078125
        %544 = vmatpush.msra.mxu0 0.0078125
        %545 = vmatpush.msra.mxu0 0.0078125
        %546 = vmatpush.msra.mxu0 0.0078125
        %547 = vmatpush.msra.mxu0 0.0078125
        %548 = vmatpush.msra.mxu0 0.0078125
        %549 = vmatpush.msra.mxu0 0.0078125
        %550 = vmatpush.msra.mxu0 0.0078125
        %551 = vmatmul.f32.gmra.mxu0 %v527
        %v552 = vpop.f32.mrf.mxu0
        %v553 = vadd.f32 0.0, %v552
        %554 = vmatmul.f32.gmra.mxu0 %v528
        %v555 = vpop.f32.mrf.mxu0
        %v556 = vadd.f32 0.0, %v555
        %557 = vmatmul.f32.gmra.mxu0 %v529
        %v558 = vpop.f32.mrf.mxu0
        %v559 = vadd.f32 0.0, %v558
        %560 = vmatmul.f32.gmra.mxu0 %v530
        %v561 = vpop.f32.mrf.mxu0
        %v562 = vadd.f32 0.0, %v561
        %563 = vmatmul.f32.gmra.mxu0 %v531
        %v564 = vpop.f32.mrf.mxu0
        %v565 = vadd.f32 0.0, %v564
        %566 = vmatmul.f32.gmra.mxu0 %v532
        %v567 = vpop.f32.mrf.mxu0
        %v568 = vadd.f32 0.0, %v567
        %569 = vmatmul.f32.gmra.mxu0 %v533
        %v570 = vpop.f32.mrf.mxu0
        %v571 = vadd.f32 0.0, %v570
        %572 = vmatmul.f32.gmra.mxu0 %v534
        %v573 = vpop.f32.mrf.mxu0
        %v574 = vadd.f32 0.0, %v573
        %575 = vdwg.mxu0
        %v576 = vmul.f32 %v504, %v504
        %v577 = vmul.f32 %v507, %v507
        %v578 = vmul.f32 %v510, %v510
        %v579 = vmul.f32 %v513, %v513
        %v580 = vmul.f32 %v516, %v516
        %v581 = vmul.f32 %v519, %v519
        %v582 = vmul.f32 %v522, %v522
        %v583 = vmul.f32 %v525, %v525
        %v584 = vsub.f32 %v553, %v576
        %v585 = vsub.f32 %v556, %v577
        %v586 = vsub.f32 %v559, %v578
        %v587 = vsub.f32 %v562, %v579
        %v588 = vsub.f32 %v565, %v580
        %v589 = vsub.f32 %v568, %v581
        %v590 = vsub.f32 %v571, %v582
        %v591 = vsub.f32 %v574, %v583
        %593 = vset.pattern.permute.xlu0 0
        %594 = vperm.xlu0 %593, %v504
        %v595 = vpop.permute.xlu0 %594
        %598 = vset.pattern.permute.xlu0 0
        %599 = vperm.xlu0 %598, %v507
        %v600 = vpop.permute.xlu0 %599
        %603 = vset.pattern.permute.xlu0 0
        %604 = vperm.xlu0 %603, %v510
        %v605 = vpop.permute.xlu0 %604
        %608 = vset.pattern.permute.xlu0 0
        %609 = vperm.xlu0 %608, %v513
        %v610 = vpop.permute.xlu0 %609
        %613 = vset.pattern.permute.xlu0 0
        %614 = vperm.xlu0 %613, %v516
        %v615 = vpop.permute.xlu0 %614
        %618 = vset.pattern.permute.xlu0 0
        %619 = vperm.xlu0 %618, %v519
        %v620 = vpop.permute.xlu0 %619
        %623 = vset.pattern.permute.xlu0 0
        %624 = vperm.xlu0 %623, %v522
        %v625 = vpop.permute.xlu0 %624
        %628 = vset.pattern.permute.xlu0 0
        %629 = vperm.xlu0 %628, %v525
        %v630 = vpop.permute.xlu0 %629
        %v632 = vsub.f32 %v461, %v595
        %v633 = vsub.f32 %v464, %v600
        %v634 = vsub.f32 %v467, %v605
        %v635 = vsub.f32 %v470, %v610
        %v636 = vsub.f32 %v473, %v615
        %v637 = vsub.f32 %v476, %v620
        %v638 = vsub.f32 %v479, %v625
        %v639 = vsub.f32 %v482, %v630
        %v640 = vadd.f32 %v584, 1e-05
        %v641 = vadd.f32 %v585, 1e-05
        %v642 = vadd.f32 %v586, 1e-05
        %v643 = vadd.f32 %v587, 1e-05
        %v644 = vadd.f32 %v588, 1e-05
        %v645 = vadd.f32 %v589, 1e-05
        %v646 = vadd.f32 %v590, 1e-05
        %v647 = vadd.f32 %v591, 1e-05
        %v648 = vrsqrt.pop %v640
        %v649 = vmul.f32 %v648, %v640
        %v650 = vmul.f32 %v649, %v648
        %v651 = vmul.f32 0.5, %v650
        %v652 = vsub.f32 1.5, %v651
        %v653 = vmul.f32 %v648, %v652
        %vm654 = vweird.f32 %v640
        %vm655 = vweird.f32 %v648
        %vm656 = vmor %vm654, %vm655
        %v657 = vsel %vm656, %v648, %v653
        %v658 = vrsqrt.pop %v641
        %v659 = vmul.f32 %v658, %v641
        %v660 = vmul.f32 %v659, %v658
        %v661 = vmul.f32 0.5, %v660
        %v662 = vsub.f32 1.5, %v661
        %v663 = vmul.f32 %v658, %v662
        %vm664 = vweird.f32 %v641
        %vm665 = vweird.f32 %v658
        %vm666 = vmor %vm664, %vm665
        %v667 = vsel %vm666, %v658, %v663
        %v668 = vrsqrt.pop %v642
        %v669 = vmul.f32 %v668, %v642
        %v670 = vmul.f32 %v669, %v668
        %v671 = vmul.f32 0.5, %v670
        %v672 = vsub.f32 1.5, %v671
        %v673 = vmul.f32 %v668, %v672
        %vm674 = vweird.f32 %v642
        %vm675 = vweird.f32 %v668
        %vm676 = vmor %vm674, %vm675
        %v677 = vsel %vm676, %v668, %v673
        %v678 = vrsqrt.pop %v643
        %v679 = vmul.f32 %v678, %v643
        %v680 = vmul.f32 %v679, %v678
        %v681 = vmul.f32 0.5, %v680
        %v682 = vsub.f32 1.5, %v681
        %v683 = vmul.f32 %v678, %v682
        %vm684 = vweird.f32 %v643
        %vm685 = vweird.f32 %v678
        %vm686 = vmor %vm684, %vm685
        %v687 = vsel %vm686, %v678, %v683
        %v688 = vrsqrt.pop %v644
        %v689 = vmul.f32 %v688, %v644
        %v690 = vmul.f32 %v689, %v688
        %v691 = vmul.f32 0.5, %v690
        %v692 = vsub.f32 1.5, %v691
        %v693 = vmul.f32 %v688, %v692
        %vm694 = vweird.f32 %v644
        %vm695 = vweird.f32 %v688
        %vm696 = vmor %vm694, %vm695
        %v697 = vsel %vm696, %v688, %v693
        %v698 = vrsqrt.pop %v645
        %v699 = vmul.f32 %v698, %v645
        %v700 = vmul.f32 %v699, %v698
        %v701 = vmul.f32 0.5, %v700
        %v702 = vsub.f32 1.5, %v701
        %v703 = vmul.f32 %v698, %v702
        %vm704 = vweird.f32 %v645
        %vm705 = vweird.f32 %v698
        %vm706 = vmor %vm704, %vm705
        %v707 = vsel %vm706, %v698, %v703
        %v708 = vrsqrt.pop %v646
        %v709 = vmul.f32 %v708, %v646
        %v710 = vmul.f32 %v709, %v708
        %v711 = vmul.f32 0.5, %v710
        %v712 = vsub.f32 1.5, %v711
        %v713 = vmul.f32 %v708, %v712
        %vm714 = vweird.f32 %v646
        %vm715 = vweird.f32 %v708
        %vm716 = vmor %vm714, %vm715
        %v717 = vsel %vm716, %v708, %v713
        %v718 = vrsqrt.pop %v647
        %v719 = vmul.f32 %v718, %v647
        %v720 = vmul.f32 %v719, %v718
        %v721 = vmul.f32 0.5, %v720
        %v722 = vsub.f32 1.5, %v721
        %v723 = vmul.f32 %v718, %v722
        %vm724 = vweird.f32 %v647
        %vm725 = vweird.f32 %v718
        %vm726 = vmor %vm724, %vm725
        %v727 = vsel %vm726, %v718, %v723
        %729 = vset.pattern.permute.xlu0 0
        %730 = vperm.xlu0 %729, %v657
        %v731 = vpop.permute.xlu0 %730
        %734 = vset.pattern.permute.xlu0 0
        %735 = vperm.xlu0 %734, %v667
        %v736 = vpop.permute.xlu0 %735
        %739 = vset.pattern.permute.xlu0 0
        %740 = vperm.xlu0 %739, %v677
        %v741 = vpop.permute.xlu0 %740
        %744 = vset.pattern.permute.xlu0 0
        %745 = vperm.xlu0 %744, %v687
        %v746 = vpop.permute.xlu0 %745
        %749 = vset.pattern.permute.xlu0 0
        %750 = vperm.xlu0 %749, %v697
        %v751 = vpop.permute.xlu0 %750
        %754 = vset.pattern.permute.xlu0 0
        %755 = vperm.xlu0 %754, %v707
        %v756 = vpop.permute.xlu0 %755
        %759 = vset.pattern.permute.xlu0 0
        %760 = vperm.xlu0 %759, %v717
        %v761 = vpop.permute.xlu0 %760
        %764 = vset.pattern.permute.xlu0 0
        %765 = vperm.xlu0 %764, %v727
        %v766 = vpop.permute.xlu0 %765
        %v768 = vmul.f32 %v632, %v731
        %v769 = vmul.f32 %v633, %v736
        %v770 = vmul.f32 %v634, %v741
        %v771 = vmul.f32 %v635, %v746
        %v772 = vmul.f32 %v636, %v751
        %v773 = vmul.f32 %v637, %v756
        %v774 = vmul.f32 %v638, %v761
        %v775 = vmul.f32 %v639, %v766
        %v777 = vperm.slane %v484, 0
        %v779 = vmul.f32 %v768, %v777
        %v780 = vmul.f32 %v769, %v777
        %v781 = vmul.f32 %v770, %v777
        %v782 = vmul.f32 %v771, %v777
        %v783 = vmul.f32 %v772, %v777
        %v784 = vmul.f32 %v773, %v777
        %v785 = vmul.f32 %v774, %v777
        %v786 = vmul.f32 %v775, %v777
        %v788 = vperm.slane %v485, 0
        %v790 = vadd.f32 %v779, %v788
        %v791 = vadd.f32 %v780, %v788
        %v792 = vadd.f32 %v781, %v788
        %v793 = vadd.f32 %v782, %v788
        %v794 = vadd.f32 %v783, %v788
        %v795 = vadd.f32 %v784, %v788
        %v796 = vadd.f32 %v785, %v788
        %v797 = vadd.f32 %v786, %v788
        %v798 = vmul.f32 %v790, 0.5
        %v799 = vmul.f32 %v791, 0.5
        %v800 = vmul.f32 %v792, 0.5
        %v801 = vmul.f32 %v793, 0.5
        %v802 = vmul.f32 %v794, 0.5
        %v803 = vmul.f32 %v795, 0.5
        %v804 = vmul.f32 %v796, 0.5
        %v805 = vmul.f32 %v797, 0.5
        %v806 = vmul.f32 %v790, 0.70710677
        %v807 = vmul.f32 %v791, 0.70710677
        %v808 = vmul.f32 %v792, 0.70710677
        %v809 = vmul.f32 %v793, 0.70710677
        %v810 = vmul.f32 %v794, 0.70710677
        %v811 = vmul.f32 %v795, 0.70710677
        %v812 = vmul.f32 %v796, 0.70710677
        %v813 = vmul.f32 %v797, 0.70710677
        %v814 = vmul.f32 %v806, %v806
        %v815 = vmin.f32 16.0, %v814
        %v816 = vmul.f32 %v815, 2.1237322e-06
        %v817 = vadd.f32 %v816, 0.00028619796
        %v818 = vmul.f32 %v815, %v817
        %v819 = vadd.f32 %v818, 0.0036580483
        %v820 = vmul.f32 %v815, %v819
        %v821 = vadd.f32 %v820, 0.05243302
        %v822 = vmul.f32 %v815, %v821
        %v823 = vadd.f32 %v822, 0.18741608
        %v824 = vmul.f32 %v815, %v823
        %v825 = vadd.f32 %v824, 1.1283791
        %v826 = vmul.f32 %v806, %v825
        %v827 = vmul.f32 %v815, 3.8918573e-05
        %v828 = vadd.f32 %v827, 0.001143296
        %v829 = vmul.f32 %v815, %v828
        %v830 = vadd.f32 %v829, 0.014752088
        %v831 = vmul.f32 %v815, %v830
        %v832 = vadd.f32 %v831, 0.112945676
        %v833 = vmul.f32 %v815, %v832
        %v834 = vadd.f32 %v833, 0.4994258
        %v835 = vmul.f32 %v815, %v834
        %v836 = vadd.f32 %v835, 1.0
        %v837 = vrcp.pop %v836
        %v838 = vmul.f32 %v836, %v837
        %v839 = vsub.f32 1.0, %v838
        %v840 = vmul.f32 %v837, %v839
        %v841 = vadd.f32 %v837, %v840
        %vm842 = vweird.f32 %v836
        %vm843 = vweird.f32 %v837
        %vm844 = vmor %vm842, %vm843
        %v845 = vsel %vm844, %v837, %v841
        %v846 = vand.u32 2147483647, %v836
        %vm847 = vcmp.eq.f32.partialorder %v846, 8.507059e+37
        %v848 = vand.u32 %v836, 2147483648
        %v849 = vor.u32 1.1754944e-38, %v848
        %v850 = vsel %vm847, %v849, %v845
        %v851 = vmul.f32 %v826, %v850
        %v852 = vmin.f32 %v851, 1.0
        %v853 = vmax.f32 %v852, -1.0
        %v854 = vmul.f32 %v807, %v807
        %v855 = vmin.f32 16.0, %v854
        %v856 = vmul.f32 %v855, 2.1237322e-06
        %v857 = vadd.f32 %v856, 0.00028619796
        %v858 = vmul.f32 %v855, %v857
        %v859 = vadd.f32 %v858, 0.0036580483
        %v860 = vmul.f32 %v855, %v859
        %v861 = vadd.f32 %v860, 0.05243302
        %v862 = vmul.f32 %v855, %v861
        %v863 = vadd.f32 %v862, 0.18741608
        %v864 = vmul.f32 %v855, %v863
        %v865 = vadd.f32 %v864, 1.1283791
        %v866 = vmul.f32 %v807, %v865
        %v867 = vmul.f32 %v855, 3.8918573e-05
        %v868 = vadd.f32 %v867, 0.001143296
        %v869 = vmul.f32 %v855, %v868
        %v870 = vadd.f32 %v869, 0.014752088
        %v871 = vmul.f32 %v855, %v870
        %v872 = vadd.f32 %v871, 0.112945676
        %v873 = vmul.f32 %v855, %v872
        %v874 = vadd.f32 %v873, 0.4994258
        %v875 = vmul.f32 %v855, %v874
        %v876 = vadd.f32 %v875, 1.0
        %v877 = vrcp.pop %v876
        %v878 = vmul.f32 %v876, %v877
        %v879 = vsub.f32 1.0, %v878
        %v880 = vmul.f32 %v877, %v879
        %v881 = vadd.f32 %v877, %v880
        %vm882 = vweird.f32 %v876
        %vm883 = vweird.f32 %v877
        %vm884 = vmor %vm882, %vm883
        %v885 = vsel %vm884, %v877, %v881
        %v886 = vand.u32 2147483647, %v876
        %vm887 = vcmp.eq.f32.partialorder %v886, 8.507059e+37
        %v888 = vand.u32 %v876, 2147483648
        %v889 = vor.u32 1.1754944e-38, %v888
        %v890 = vsel %vm887, %v889, %v885
        %v891 = vmul.f32 %v866, %v890
        %v892 = vmin.f32 %v891, 1.0
        %v893 = vmax.f32 %v892, -1.0
        %v894 = vmul.f32 %v808, %v808
        %v895 = vmin.f32 16.0, %v894
        %v896 = vmul.f32 %v895, 2.1237322e-06
        %v897 = vadd.f32 %v896, 0.00028619796
        %v898 = vmul.f32 %v895, %v897
        %v899 = vadd.f32 %v898, 0.0036580483
        %v900 = vmul.f32 %v895, %v899
        %v901 = vadd.f32 %v900, 0.05243302
        %v902 = vmul.f32 %v895, %v901
        %v903 = vadd.f32 %v902, 0.18741608
        %v904 = vmul.f32 %v895, %v903
        %v905 = vadd.f32 %v904, 1.1283791
        %v906 = vmul.f32 %v808, %v905
        %v907 = vmul.f32 %v895, 3.8918573e-05
        %v908 = vadd.f32 %v907, 0.001143296
        %v909 = vmul.f32 %v895, %v908
        %v910 = vadd.f32 %v909, 0.014752088
        %v911 = vmul.f32 %v895, %v910
        %v912 = vadd.f32 %v911, 0.112945676
        %v913 = vmul.f32 %v895, %v912
        %v914 = vadd.f32 %v913, 0.4994258
        %v915 = vmul.f32 %v895, %v914
        %v916 = vadd.f32 %v915, 1.0
        %v917 = vrcp.pop %v916
        %v918 = vmul.f32 %v916, %v917
        %v919 = vsub.f32 1.0, %v918
        %v920 = vmul.f32 %v917, %v919
        %v921 = vadd.f32 %v917, %v920
        %vm922 = vweird.f32 %v916
        %vm923 = vweird.f32 %v917
        %vm924 = vmor %vm922, %vm923
        %v925 = vsel %vm924, %v917, %v921
        %v926 = vand.u32 2147483647, %v916
        %vm927 = vcmp.eq.f32.partialorder %v926, 8.507059e+37
        %v928 = vand.u32 %v916, 2147483648
        %v929 = vor.u32 1.1754944e-38, %v928
        %v930 = vsel %vm927, %v929, %v925
        %v931 = vmul.f32 %v906, %v930
        %v932 = vmin.f32 %v931, 1.0
        %v933 = vmax.f32 %v932, -1.0
        %v934 = vmul.f32 %v809, %v809
        %v935 = vmin.f32 16.0, %v934
        %v936 = vmul.f32 %v935, 2.1237322e-06
        %v937 = vadd.f32 %v936, 0.00028619796
        %v938 = vmul.f32 %v935, %v937
        %v939 = vadd.f32 %v938, 0.0036580483
        %v940 = vmul.f32 %v935, %v939
        %v941 = vadd.f32 %v940, 0.05243302
        %v942 = vmul.f32 %v935, %v941
        %v943 = vadd.f32 %v942, 0.18741608
        %v944 = vmul.f32 %v935, %v943
        %v945 = vadd.f32 %v944, 1.1283791
        %v946 = vmul.f32 %v809, %v945
        %v947 = vmul.f32 %v935, 3.8918573e-05
        %v948 = vadd.f32 %v947, 0.001143296
        %v949 = vmul.f32 %v935, %v948
        %v950 = vadd.f32 %v949, 0.014752088
        %v951 = vmul.f32 %v935, %v950
        %v952 = vadd.f32 %v951, 0.112945676
        %v953 = vmul.f32 %v935, %v952
        %v954 = vadd.f32 %v953, 0.4994258
        %v955 = vmul.f32 %v935, %v954
        %v956 = vadd.f32 %v955, 1.0
        %v957 = vrcp.pop %v956
        %v958 = vmul.f32 %v956, %v957
        %v959 = vsub.f32 1.0, %v958
        %v960 = vmul.f32 %v957, %v959
        %v961 = vadd.f32 %v957, %v960
        %vm962 = vweird.f32 %v956
        %vm963 = vweird.f32 %v957
        %vm964 = vmor %vm962, %vm963
        %v965 = vsel %vm964, %v957, %v961
        %v966 = vand.u32 2147483647, %v956
        %vm967 = vcmp.eq.f32.partialorder %v966, 8.507059e+37
        %v968 = vand.u32 %v956, 2147483648
        %v969 = vor.u32 1.1754944e-38, %v968
        %v970 = vsel %vm967, %v969, %v965
        %v971 = vmul.f32 %v946, %v970
        %v972 = vmin.f32 %v971, 1.0
        %v973 = vmax.f32 %v972, -1.0
        %v974 = vmul.f32 %v810, %v810
        %v975 = vmin.f32 16.0, %v974
        %v976 = vmul.f32 %v975, 2.1237322e-06
        %v977 = vadd.f32 %v976, 0.00028619796
        %v978 = vmul.f32 %v975, %v977
        %v979 = vadd.f32 %v978, 0.0036580483
        %v980 = vmul.f32 %v975, %v979
        %v981 = vadd.f32 %v980, 0.05243302
        %v982 = vmul.f32 %v975, %v981
        %v983 = vadd.f32 %v982, 0.18741608
        %v984 = vmul.f32 %v975, %v983
        %v985 = vadd.f32 %v984, 1.1283791
        %v986 = vmul.f32 %v810, %v985
        %v987 = vmul.f32 %v975, 3.8918573e-05
        %v988 = vadd.f32 %v987, 0.001143296
        %v989 = vmul.f32 %v975, %v988
        %v990 = vadd.f32 %v989, 0.014752088
        %v991 = vmul.f32 %v975, %v990
        %v992 = vadd.f32 %v991, 0.112945676
        %v993 = vmul.f32 %v975, %v992
        %v994 = vadd.f32 %v993, 0.4994258
        %v995 = vmul.f32 %v975, %v994
        %v996 = vadd.f32 %v995, 1.0
        %v997 = vrcp.pop %v996
        %v998 = vmul.f32 %v996, %v997
        %v999 = vsub.f32 1.0, %v998
        %v1000 = vmul.f32 %v997, %v999
        %v1001 = vadd.f32 %v997, %v1000
        %vm1002 = vweird.f32 %v996
        %vm1003 = vweird.f32 %v997
        %vm1004 = vmor %vm1002, %vm1003
        %v1005 = vsel %vm1004, %v997, %v1001
        %v1006 = vand.u32 2147483647, %v996
        %vm1007 = vcmp.eq.f32.partialorder %v1006, 8.507059e+37
        %v1008 = vand.u32 %v996, 2147483648
        %v1009 = vor.u32 1.1754944e-38, %v1008
        %v1010 = vsel %vm1007, %v1009, %v1005
        %v1011 = vmul.f32 %v986, %v1010
        %v1012 = vmin.f32 %v1011, 1.0
        %v1013 = vmax.f32 %v1012, -1.0
        %v1014 = vmul.f32 %v811, %v811
        %v1015 = vmin.f32 16.0, %v1014
        %v1016 = vmul.f32 %v1015, 2.1237322e-06
        %v1017 = vadd.f32 %v1016, 0.00028619796
        %v1018 = vmul.f32 %v1015, %v1017
        %v1019 = vadd.f32 %v1018, 0.0036580483
        %v1020 = vmul.f32 %v1015, %v1019
        %v1021 = vadd.f32 %v1020, 0.05243302
        %v1022 = vmul.f32 %v1015, %v1021
        %v1023 = vadd.f32 %v1022, 0.18741608
        %v1024 = vmul.f32 %v1015, %v1023
        %v1025 = vadd.f32 %v1024, 1.1283791
        %v1026 = vmul.f32 %v811, %v1025
        %v1027 = vmul.f32 %v1015, 3.8918573e-05
        %v1028 = vadd.f32 %v1027, 0.001143296
        %v1029 = vmul.f32 %v1015, %v1028
        %v1030 = vadd.f32 %v1029, 0.014752088
        %v1031 = vmul.f32 %v1015, %v1030
        %v1032 = vadd.f32 %v1031, 0.112945676
        %v1033 = vmul.f32 %v1015, %v1032
        %v1034 = vadd.f32 %v1033, 0.4994258
        %v1035 = vmul.f32 %v1015, %v1034
        %v1036 = vadd.f32 %v1035, 1.0
        %v1037 = vrcp.pop %v1036
        %v1038 = vmul.f32 %v1036, %v1037
        %v1039 = vsub.f32 1.0, %v1038
        %v1040 = vmul.f32 %v1037, %v1039
        %v1041 = vadd.f32 %v1037, %v1040
        %vm1042 = vweird.f32 %v1036
        %vm1043 = vweird.f32 %v1037
        %vm1044 = vmor %vm1042, %vm1043
        %v1045 = vsel %vm1044, %v1037, %v1041
        %v1046 = vand.u32 2147483647, %v1036
        %vm1047 = vcmp.eq.f32.partialorder %v1046, 8.507059e+37
        %v1048 = vand.u32 %v1036, 2147483648
        %v1049 = vor.u32 1.1754944e-38, %v1048
        %v1050 = vsel %vm1047, %v1049, %v1045
        %v1051 = vmul.f32 %v1026, %v1050
        %v1052 = vmin.f32 %v1051, 1.0
        %v1053 = vmax.f32 %v1052, -1.0
        %v1054 = vmul.f32 %v812, %v812
        %v1055 = vmin.f32 16.0, %v1054
        %v1056 = vmul.f32 %v1055, 2.1237322e-06
        %v1057 = vadd.f32 %v1056, 0.00028619796
        %v1058 = vmul.f32 %v1055, %v1057
        %v1059 = vadd.f32 %v1058, 0.0036580483
        %v1060 = vmul.f32 %v1055, %v1059
        %v1061 = vadd.f32 %v1060, 0.05243302
        %v1062 = vmul.f32 %v1055, %v1061
        %v1063 = vadd.f32 %v1062, 0.18741608
        %v1064 = vmul.f32 %v1055, %v1063
        %v1065 = vadd.f32 %v1064, 1.1283791
        %v1066 = vmul.f32 %v812, %v1065
        %v1067 = vmul.f32 %v1055, 3.8918573e-05
        %v1068 = vadd.f32 %v1067, 0.001143296
        %v1069 = vmul.f32 %v1055, %v1068
        %v1070 = vadd.f32 %v1069, 0.014752088
        %v1071 = vmul.f32 %v1055, %v1070
        %v1072 = vadd.f32 %v1071, 0.112945676
        %v1073 = vmul.f32 %v1055, %v1072
        %v1074 = vadd.f32 %v1073, 0.4994258
        %v1075 = vmul.f32 %v1055, %v1074
        %v1076 = vadd.f32 %v1075, 1.0
        %v1077 = vrcp.pop %v1076
        %v1078 = vmul.f32 %v1076, %v1077
        %v1079 = vsub.f32 1.0, %v1078
        %v1080 = vmul.f32 %v1077, %v1079
        %v1081 = vadd.f32 %v1077, %v1080
        %vm1082 = vweird.f32 %v1076
        %vm1083 = vweird.f32 %v1077
        %vm1084 = vmor %vm1082, %vm1083
        %v1085 = vsel %vm1084, %v1077, %v1081
        %v1086 = vand.u32 2147483647, %v1076
        %vm1087 = vcmp.eq.f32.partialorder %v1086, 8.507059e+37
        %v1088 = vand.u32 %v1076, 2147483648
        %v1089 = vor.u32 1.1754944e-38, %v1088
        %v1090 = vsel %vm1087, %v1089, %v1085
        %v1091 = vmul.f32 %v1066, %v1090
        %v1092 = vmin.f32 %v1091, 1.0
        %v1093 = vmax.f32 %v1092, -1.0
        %v1094 = vmul.f32 %v813, %v813
        %v1095 = vmin.f32 16.0, %v1094
        %v1096 = vmul.f32 %v1095, 2.1237322e-06
        %v1097 = vadd.f32 %v1096, 0.00028619796
        %v1098 = vmul.f32 %v1095, %v1097
        %v1099 = vadd.f32 %v1098, 0.0036580483
        %v1100 = vmul.f32 %v1095, %v1099
        %v1101 = vadd.f32 %v1100, 0.05243302
        %v1102 = vmul.f32 %v1095, %v1101
        %v1103 = vadd.f32 %v1102, 0.18741608
        %v1104 = vmul.f32 %v1095, %v1103
        %v1105 = vadd.f32 %v1104, 1.1283791
        %v1106 = vmul.f32 %v813, %v1105
        %v1107 = vmul.f32 %v1095, 3.8918573e-05
        %v1108 = vadd.f32 %v1107, 0.001143296
        %v1109 = vmul.f32 %v1095, %v1108
        %v1110 = vadd.f32 %v1109, 0.014752088
        %v1111 = vmul.f32 %v1095, %v1110
        %v1112 = vadd.f32 %v1111, 0.112945676
        %v1113 = vmul.f32 %v1095, %v1112
        %v1114 = vadd.f32 %v1113, 0.4994258
        %v1115 = vmul.f32 %v1095, %v1114
        %v1116 = vadd.f32 %v1115, 1.0
        %v1117 = vrcp.pop %v1116
        %v1118 = vmul.f32 %v1116, %v1117
        %v1119 = vsub.f32 1.0, %v1118
        %v1120 = vmul.f32 %v1117, %v1119
        %v1121 = vadd.f32 %v1117, %v1120
        %vm1122 = vweird.f32 %v1116
        %vm1123 = vweird.f32 %v1117
        %vm1124 = vmor %vm1122, %vm1123
        %v1125 = vsel %vm1124, %v1117, %v1121
        %v1126 = vand.u32 2147483647, %v1116
        %vm1127 = vcmp.eq.f32.partialorder %v1126, 8.507059e+37
        %v1128 = vand.u32 %v1116, 2147483648
        %v1129 = vor.u32 1.1754944e-38, %v1128
        %v1130 = vsel %vm1127, %v1129, %v1125
        %v1131 = vmul.f32 %v1106, %v1130
        %v1132 = vmin.f32 %v1131, 1.0
        %v1133 = vmax.f32 %v1132, -1.0
        %v1134 = vadd.f32 %v853, 1.0
        %v1135 = vadd.f32 %v893, 1.0
        %v1136 = vadd.f32 %v933, 1.0
        %v1137 = vadd.f32 %v973, 1.0
        %v1138 = vadd.f32 %v1013, 1.0
        %v1139 = vadd.f32 %v1053, 1.0
        %v1140 = vadd.f32 %v1093, 1.0
        %v1141 = vadd.f32 %v1133, 1.0
        %v1142 = vmul.f32 %v798, %v1134
        %v1143 = vmul.f32 %v799, %v1135
        %v1144 = vmul.f32 %v800, %v1136
        %v1145 = vmul.f32 %v801, %v1137
        %v1146 = vmul.f32 %v802, %v1138
        %v1147 = vmul.f32 %v803, %v1139
        %v1148 = vmul.f32 %v804, %v1140
        %v1149 = vmul.f32 %v805, %v1141
        %v1150 = vld [vmem:[%s5] sm:$0xff]
        %v1151 = vld [vmem:[%s5 + $0x8] sm:$0xff]
        %v1152 = vld [vmem:[%s5 + $0x10] sm:$0xff]
        %v1153 = vld [vmem:[%s5 + $0x18] sm:$0xff]
        %v1154 = vld [vmem:[%s5 + $0x20] sm:$0xff]
        %v1155 = vld [vmem:[%s5 + $0x28] sm:$0xff]
        %v1156 = vld [vmem:[%s5 + $0x30] sm:$0xff]
        %v1157 = vld [vmem:[%s5 + $0x38] sm:$0xff]
        %v1158 = vld [vmem:[%s5 + $0x40] sm:$0xff]
        %v1159 = vld [vmem:[%s5 + $0x48] sm:$0xff]
        %v1160 = vld [vmem:[%s5 + $0x50] sm:$0xff]
        %v1161 = vld [vmem:[%s5 + $0x58] sm:$0xff]
        %v1162 = vld [vmem:[%s5 + $0x60] sm:$0xff]
        %v1163 = vld [vmem:[%s5 + $0x68] sm:$0xff]
        %v1164 = vld [vmem:[%s5 + $0x70] sm:$0xff]
        %v1165 = vld [vmem:[%s5 + $0x78] sm:$0xff]
        %v1166 = vld [vmem:[%s6] sm:$0x1]
        %v1168 = vperm.slane %v1166, 0
        %1170 = vmatpush.msra.mxu0 %v1165
        %1171 = vmatpush.msra.mxu0 %v1164
        %1172 = vmatpush.msra.mxu0 %v1163
        %1173 = vmatpush.msra.mxu0 %v1162
        %1174 = vmatpush.msra.mxu0 %v1161
        %1175 = vmatpush.msra.mxu0 %v1160
        %1176 = vmatpush.msra.mxu0 %v1159
        %1177 = vmatpush.msra.mxu0 %v1158
        %1178 = vmatpush.msra.mxu0 %v1157
        %1179 = vmatpush.msra.mxu0 %v1156
        %1180 = vmatpush.msra.mxu0 %v1155
        %1181 = vmatpush.msra.mxu0 %v1154
        %1182 = vmatpush.msra.mxu0 %v1153
        %1183 = vmatpush.msra.mxu0 %v1152
        %1184 = vmatpush.msra.mxu0 %v1151
        %1185 = vmatpush.msra.mxu0 %v1150
        %1186 = vmatmul.f32.gmra.mxu0 %v1142
        %v1187 = vpop.f32.mrf.mxu0
        %v1188 = vadd.f32 %v1168, %v1187
        %1189 = vmatmul.f32.gmra.mxu0 %v1143
        %v1190 = vpop.f32.mrf.mxu0
        %v1191 = vadd.f32 %v1168, %v1190
        %1192 = vmatmul.f32.gmra.mxu0 %v1144
        %v1193 = vpop.f32.mrf.mxu0
        %v1194 = vadd.f32 %v1168, %v1193
        %1195 = vmatmul.f32.gmra.mxu0 %v1145
        %v1196 = vpop.f32.mrf.mxu0
        %v1197 = vadd.f32 %v1168, %v1196
        %1198 = vmatmul.f32.gmra.mxu0 %v1146
        %v1199 = vpop.f32.mrf.mxu0
        %v1200 = vadd.f32 %v1168, %v1199
        %1201 = vmatmul.f32.gmra.mxu0 %v1147
        %v1202 = vpop.f32.mrf.mxu0
        %v1203 = vadd.f32 %v1168, %v1202
        %1204 = vmatmul.f32.gmra.mxu0 %v1148
        %v1205 = vpop.f32.mrf.mxu0
        %v1206 = vadd.f32 %v1168, %v1205
        %1207 = vmatmul.f32.gmra.mxu0 %v1149
        %v1208 = vpop.f32.mrf.mxu0
        %v1209 = vadd.f32 %v1168, %v1208
        %1210 = vdwg.mxu0
        %v1211 = vld [vmem:[%s7] sm:$0x1]
        %v1212 = vld [vmem:[%s8] sm:$0x1]
        %1213 = vmatpush.msra.mxu0 0.0078125
        %1214 = vmatpush.msra.mxu0 0.0078125
        %1215 = vmatpush.msra.mxu0 0.0078125
        %1216 = vmatpush.msra.mxu0 0.0078125
        %1217 = vmatpush.msra.mxu0 0.0078125
        %1218 = vmatpush.msra.mxu0 0.0078125
        %1219 = vmatpush.msra.mxu0 0.0078125
        %1220 = vmatpush.msra.mxu0 0.0078125
        %1221 = vmatpush.msra.mxu0 0.0078125
        %1222 = vmatpush.msra.mxu0 0.0078125
        %1223 = vmatpush.msra.mxu0 0.0078125
        %1224 = vmatpush.msra.mxu0 0.0078125
        %1225 = vmatpush.msra.mxu0 0.0078125
        %1226 = vmatpush.msra.mxu0 0.0078125
        %1227 = vmatpush.msra.mxu0 0.0078125
        %1228 = vmatpush.msra.mxu0 0.0078125
        %1229 = vmatmul.f32.gmra.mxu0 %v1188
        %v1230 = vpop.f32.mrf.mxu0
        %v1231 = vadd.f32 0.0, %v1230
        %1232 = vmatmul.f32.gmra.mxu0 %v1191
        %v1233 = vpop.f32.mrf.mxu0
        %v1234 = vadd.f32 0.0, %v1233
        %1235 = vmatmul.f32.gmra.mxu0 %v1194
        %v1236 = vpop.f32.mrf.mxu0
        %v1237 = vadd.f32 0.0, %v1236
        %1238 = vmatmul.f32.gmra.mxu0 %v1197
        %v1239 = vpop.f32.mrf.mxu0
        %v1240 = vadd.f32 0.0, %v1239
        %1241 = vmatmul.f32.gmra.mxu0 %v1200
        %v1242 = vpop.f32.mrf.mxu0
        %v1243 = vadd.f32 0.0, %v1242
        %1244 = vmatmul.f32.gmra.mxu0 %v1203
        %v1245 = vpop.f32.mrf.mxu0
        %v1246 = vadd.f32 0.0, %v1245
        %1247 = vmatmul.f32.gmra.mxu0 %v1206
        %v1248 = vpop.f32.mrf.mxu0
        %v1249 = vadd.f32 0.0, %v1248
        %1250 = vmatmul.f32.gmra.mxu0 %v1209
        %v1251 = vpop.f32.mrf.mxu0
        %v1252 = vadd.f32 0.0, %v1251
        %1253 = vdwg.mxu0
        %v1254 = vmul.f32 %v1188, %v1188
        %v1255 = vmul.f32 %v1191, %v1191
        %v1256 = vmul.f32 %v1194, %v1194
        %v1257 = vmul.f32 %v1197, %v1197
        %v1258 = vmul.f32 %v1200, %v1200
        %v1259 = vmul.f32 %v1203, %v1203
        %v1260 = vmul.f32 %v1206, %v1206
        %v1261 = vmul.f32 %v1209, %v1209
        %1262 = vmatpush.msra.mxu0 0.0078125
        %1263 = vmatpush.msra.mxu0 0.0078125
        %1264 = vmatpush.msra.mxu0 0.0078125
        %1265 = vmatpush.msra.mxu0 0.0078125
        %1266 = vmatpush.msra.mxu0 0.0078125
        %1267 = vmatpush.msra.mxu0 0.0078125
        %1268 = vmatpush.msra.mxu0 0.0078125
        %1269 = vmatpush.msra.mxu0 0.0078125
        %1270 = vmatpush.msra.mxu0 0.0078125
        %1271 = vmatpush.msra.mxu0 0.0078125
        %1272 = vmatpush.msra.mxu0 0.0078125
        %1273 = vmatpush.msra.mxu0 0.0078125
        %1274 = vmatpush.msra.mxu0 0.0078125
        %1275 = vmatpush.msra.mxu0 0.0078125
        %1276 = vmatpush.msra.mxu0 0.0078125
        %1277 = vmatpush.msra.mxu0 0.0078125
        %1278 = vmatmul.f32.gmra.mxu0 %v1254
        %v1279 = vpop.f32.mrf.mxu0
        %v1280 = vadd.f32 0.0, %v1279
        %1281 = vmatmul.f32.gmra.mxu0 %v1255
        %v1282 = vpop.f32.mrf.mxu0
        %v1283 = vadd.f32 0.0, %v1282
        %1284 = vmatmul.f32.gmra.mxu0 %v1256
        %v1285 = vpop.f32.mrf.mxu0
        %v1286 = vadd.f32 0.0, %v1285
        %1287 = vmatmul.f32.gmra.mxu0 %v1257
        %v1288 = vpop.f32.mrf.mxu0
        %v1289 = vadd.f32 0.0, %v1288
        %1290 = vmatmul.f32.gmra.mxu0 %v1258
        %v1291 = vpop.f32.mrf.mxu0
        %v1292 = vadd.f32 0.0, %v1291
        %1293 = vmatmul.f32.gmra.mxu0 %v1259
        %v1294 = vpop.f32.mrf.mxu0
        %v1295 = vadd.f32 0.0, %v1294
        %1296 = vmatmul.f32.gmra.mxu0 %v1260
        %v1297 = vpop.f32.mrf.mxu0
        %v1298 = vadd.f32 0.0, %v1297
        %1299 = vmatmul.f32.gmra.mxu0 %v1261
        %v1300 = vpop.f32.mrf.mxu0
        %v1301 = vadd.f32 0.0, %v1300
        %1302 = vdwg.mxu0
        %v1303 = vmul.f32 %v1231, %v1231
        %v1304 = vmul.f32 %v1234, %v1234
        %v1305 = vmul.f32 %v1237, %v1237
        %v1306 = vmul.f32 %v1240, %v1240
        %v1307 = vmul.f32 %v1243, %v1243
        %v1308 = vmul.f32 %v1246, %v1246
        %v1309 = vmul.f32 %v1249, %v1249
        %v1310 = vmul.f32 %v1252, %v1252
        %v1311 = vsub.f32 %v1280, %v1303
        %v1312 = vsub.f32 %v1283, %v1304
        %v1313 = vsub.f32 %v1286, %v1305
        %v1314 = vsub.f32 %v1289, %v1306
        %v1315 = vsub.f32 %v1292, %v1307
        %v1316 = vsub.f32 %v1295, %v1308
        %v1317 = vsub.f32 %v1298, %v1309
        %v1318 = vsub.f32 %v1301, %v1310
        %1320 = vset.pattern.permute.xlu0 0
        %1321 = vperm.xlu0 %1320, %v1231
        %v1322 = vpop.permute.xlu0 %1321
        %1325 = vset.pattern.permute.xlu0 0
        %1326 = vperm.xlu0 %1325, %v1234
        %v1327 = vpop.permute.xlu0 %1326
        %1330 = vset.pattern.permute.xlu0 0
        %1331 = vperm.xlu0 %1330, %v1237
        %v1332 = vpop.permute.xlu0 %1331
        %1335 = vset.pattern.permute.xlu0 0
        %1336 = vperm.xlu0 %1335, %v1240
        %v1337 = vpop.permute.xlu0 %1336
        %1340 = vset.pattern.permute.xlu0 0
        %1341 = vperm.xlu0 %1340, %v1243
        %v1342 = vpop.permute.xlu0 %1341
        %1345 = vset.pattern.permute.xlu0 0
        %1346 = vperm.xlu0 %1345, %v1246
        %v1347 = vpop.permute.xlu0 %1346
        %1350 = vset.pattern.permute.xlu0 0
        %1351 = vperm.xlu0 %1350, %v1249
        %v1352 = vpop.permute.xlu0 %1351
        %1355 = vset.pattern.permute.xlu0 0
        %1356 = vperm.xlu0 %1355, %v1252
        %v1357 = vpop.permute.xlu0 %1356
        %v1359 = vsub.f32 %v1188, %v1322
        %v1360 = vsub.f32 %v1191, %v1327
        %v1361 = vsub.f32 %v1194, %v1332
        %v1362 = vsub.f32 %v1197, %v1337
        %v1363 = vsub.f32 %v1200, %v1342
        %v1364 = vsub.f32 %v1203, %v1347
        %v1365 = vsub.f32 %v1206, %v1352
        %v1366 = vsub.f32 %v1209, %v1357
        %v1367 = vadd.f32 %v1311, 1e-05
        %v1368 = vadd.f32 %v1312, 1e-05
        %v1369 = vadd.f32 %v1313, 1e-05
        %v1370 = vadd.f32 %v1314, 1e-05
        %v1371 = vadd.f32 %v1315, 1e-05
        %v1372 = vadd.f32 %v1316, 1e-05
        %v1373 = vadd.f32 %v1317, 1e-05
        %v1374 = vadd.f32 %v1318, 1e-05
        %v1375 = vrsqrt.pop %v1367
        %v1376 = vmul.f32 %v1375, %v1367
        %v1377 = vmul.f32 %v1376, %v1375
        %v1378 = vmul.f32 0.5, %v1377
        %v1379 = vsub.f32 1.5, %v1378
        %v1380 = vmul.f32 %v1375, %v1379
        %vm1381 = vweird.f32 %v1367
        %vm1382 = vweird.f32 %v1375
        %vm1383 = vmor %vm1381, %vm1382
        %v1384 = vsel %vm1383, %v1375, %v1380
        %v1385 = vrsqrt.pop %v1368
        %v1386 = vmul.f32 %v1385, %v1368
        %v1387 = vmul.f32 %v1386, %v1385
        %v1388 = vmul.f32 0.5, %v1387
        %v1389 = vsub.f32 1.5, %v1388
        %v1390 = vmul.f32 %v1385, %v1389
        %vm1391 = vweird.f32 %v1368
        %vm1392 = vweird.f32 %v1385
        %vm1393 = vmor %vm1391, %vm1392
        %v1394 = vsel %vm1393, %v1385, %v1390
        %v1395 = vrsqrt.pop %v1369
        %v1396 = vmul.f32 %v1395, %v1369
        %v1397 = vmul.f32 %v1396, %v1395
        %v1398 = vmul.f32 0.5, %v1397
        %v1399 = vsub.f32 1.5, %v1398
        %v1400 = vmul.f32 %v1395, %v1399
        %vm1401 = vweird.f32 %v1369
        %vm1402 = vweird.f32 %v1395
        %vm1403 = vmor %vm1401, %vm1402
        %v1404 = vsel %vm1403, %v1395, %v1400
        %v1405 = vrsqrt.pop %v1370
        %v1406 = vmul.f32 %v1405, %v1370
        %v1407 = vmul.f32 %v1406, %v1405
        %v1408 = vmul.f32 0.5, %v1407
        %v1409 = vsub.f32 1.5, %v1408
        %v1410 = vmul.f32 %v1405, %v1409
        %vm1411 = vweird.f32 %v1370
        %vm1412 = vweird.f32 %v1405
        %vm1413 = vmor %vm1411, %vm1412
        %v1414 = vsel %vm1413, %v1405, %v1410
        %v1415 = vrsqrt.pop %v1371
        %v1416 = vmul.f32 %v1415, %v1371
        %v1417 = vmul.f32 %v1416, %v1415
        %v1418 = vmul.f32 0.5, %v1417
        %v1419 = vsub.f32 1.5, %v1418
        %v1420 = vmul.f32 %v1415, %v1419
        %vm1421 = vweird.f32 %v1371
        %vm1422 = vweird.f32 %v1415
        %vm1423 = vmor %vm1421, %vm1422
        %v1424 = vsel %vm1423, %v1415, %v1420
        %v1425 = vrsqrt.pop %v1372
        %v1426 = vmul.f32 %v1425, %v1372
        %v1427 = vmul.f32 %v1426, %v1425
        %v1428 = vmul.f32 0.5, %v1427
        %v1429 = vsub.f32 1.5, %v1428
        %v1430 = vmul.f32 %v1425, %v1429
        %vm1431 = vweird.f32 %v1372
        %vm1432 = vweird.f32 %v1425
        %vm1433 = vmor %vm1431, %vm1432
        %v1434 = vsel %vm1433, %v1425, %v1430
        %v1435 = vrsqrt.pop %v1373
        %v1436 = vmul.f32 %v1435, %v1373
        %v1437 = vmul.f32 %v1436, %v1435
        %v1438 = vmul.f32 0.5, %v1437
        %v1439 = vsub.f32 1.5, %v1438
        %v1440 = vmul.f32 %v1435, %v1439
        %vm1441 = vweird.f32 %v1373
        %vm1442 = vweird.f32 %v1435
        %vm1443 = vmor %vm1441, %vm1442
        %v1444 = vsel %vm1443, %v1435, %v1440
        %v1445 = vrsqrt.pop %v1374
        %v1446 = vmul.f32 %v1445, %v1374
        %v1447 = vmul.f32 %v1446, %v1445
        %v1448 = vmul.f32 0.5, %v1447
        %v1449 = vsub.f32 1.5, %v1448
        %v1450 = vmul.f32 %v1445, %v1449
        %vm1451 = vweird.f32 %v1374
        %vm1452 = vweird.f32 %v1445
        %vm1453 = vmor %vm1451, %vm1452
        %v1454 = vsel %vm1453, %v1445, %v1450
        %1456 = vset.pattern.permute.xlu0 0
        %1457 = vperm.xlu0 %1456, %v1384
        %v1458 = vpop.permute.xlu0 %1457
        %1461 = vset.pattern.permute.xlu0 0
        %1462 = vperm.xlu0 %1461, %v1394
        %v1463 = vpop.permute.xlu0 %1462
        %1466 = vset.pattern.permute.xlu0 0
        %1467 = vperm.xlu0 %1466, %v1404
        %v1468 = vpop.permute.xlu0 %1467
        %1471 = vset.pattern.permute.xlu0 0
        %1472 = vperm.xlu0 %1471, %v1414
        %v1473 = vpop.permute.xlu0 %1472
        %1476 = vset.pattern.permute.xlu0 0
        %1477 = vperm.xlu0 %1476, %v1424
        %v1478 = vpop.permute.xlu0 %1477
        %1481 = vset.pattern.permute.xlu0 0
        %1482 = vperm.xlu0 %1481, %v1434
        %v1483 = vpop.permute.xlu0 %1482
        %1486 = vset.pattern.permute.xlu0 0
        %1487 = vperm.xlu0 %1486, %v1444
        %v1488 = vpop.permute.xlu0 %1487
        %1491 = vset.pattern.permute.xlu0 0
        %1492 = vperm.xlu0 %1491, %v1454
        %v1493 = vpop.permute.xlu0 %1492
        %v1495 = vmul.f32 %v1359, %v1458
        %v1496 = vmul.f32 %v1360, %v1463
        %v1497 = vmul.f32 %v1361, %v1468
        %v1498 = vmul.f32 %v1362, %v1473
        %v1499 = vmul.f32 %v1363, %v1478
        %v1500 = vmul.f32 %v1364, %v1483
        %v1501 = vmul.f32 %v1365, %v1488
        %v1502 = vmul.f32 %v1366, %v1493
        %v1504 = vperm.slane %v1211, 0
        %v1506 = vmul.f32 %v1495, %v1504
        %v1507 = vmul.f32 %v1496, %v1504
        %v1508 = vmul.f32 %v1497, %v1504
        %v1509 = vmul.f32 %v1498, %v1504
        %v1510 = vmul.f32 %v1499, %v1504
        %v1511 = vmul.f32 %v1500, %v1504
        %v1512 = vmul.f32 %v1501, %v1504
        %v1513 = vmul.f32 %v1502, %v1504
        %v1515 = vperm.slane %v1212, 0
        %v1517 = vadd.f32 %v1506, %v1515
        %v1518 = vadd.f32 %v1507, %v1515
        %v1519 = vadd.f32 %v1508, %v1515
        %v1520 = vadd.f32 %v1509, %v1515
        %v1521 = vadd.f32 %v1510, %v1515
        %v1522 = vadd.f32 %v1511, %v1515
        %v1523 = vadd.f32 %v1512, %v1515
        %v1524 = vadd.f32 %v1513, %v1515
        %v1525 = vmul.f32 %v1517, 0.5
        %v1526 = vmul.f32 %v1518, 0.5
        %v1527 = vmul.f32 %v1519, 0.5
        %v1528 = vmul.f32 %v1520, 0.5
        %v1529 = vmul.f32 %v1521, 0.5
        %v1530 = vmul.f32 %v1522, 0.5
        %v1531 = vmul.f32 %v1523, 0.5
        %v1532 = vmul.f32 %v1524, 0.5
        %v1533 = vmul.f32 %v1517, 0.70710677
        %v1534 = vmul.f32 %v1518, 0.70710677
        %v1535 = vmul.f32 %v1519, 0.70710677
        %v1536 = vmul.f32 %v1520, 0.70710677
        %v1537 = vmul.f32 %v1521, 0.70710677
        %v1538 = vmul.f32 %v1522, 0.70710677
        %v1539 = vmul.f32 %v1523, 0.70710677
        %v1540 = vmul.f32 %v1524, 0.70710677
        %v1541 = vmul.f32 %v1533, %v1533
        %v1542 = vmin.f32 16.0, %v1541
        %v1543 = vmul.f32 %v1542, 2.1237322e-06
        %v1544 = vadd.f32 %v1543, 0.00028619796
        %v1545 = vmul.f32 %v1542, %v1544
        %v1546 = vadd.f32 %v1545, 0.0036580483
        %v1547 = vmul.f32 %v1542, %v1546
        %v1548 = vadd.f32 %v1547, 0.05243302
        %v1549 = vmul.f32 %v1542, %v1548
        %v1550 = vadd.f32 %v1549, 0.18741608
        %v1551 = vmul.f32 %v1542, %v1550
        %v1552 = vadd.f32 %v1551, 1.1283791
        %v1553 = vmul.f32 %v1533, %v1552
        %v1554 = vmul.f32 %v1542, 3.8918573e-05
        %v1555 = vadd.f32 %v1554, 0.001143296
        %v1556 = vmul.f32 %v1542, %v1555
        %v1557 = vadd.f32 %v1556, 0.014752088
        %v1558 = vmul.f32 %v1542, %v1557
        %v1559 = vadd.f32 %v1558, 0.112945676
        %v1560 = vmul.f32 %v1542, %v1559
        %v1561 = vadd.f32 %v1560, 0.4994258
        %v1562 = vmul.f32 %v1542, %v1561
        %v1563 = vadd.f32 %v1562, 1.0
        %v1564 = vrcp.pop %v1563
        %v1565 = vmul.f32 %v1563, %v1564
        %v1566 = vsub.f32 1.0, %v1565
        %v1567 = vmul.f32 %v1564, %v1566
        %v1568 = vadd.f32 %v1564, %v1567
        %vm1569 = vweird.f32 %v1563
        %vm1570 = vweird.f32 %v1564
        %vm1571 = vmor %vm1569, %vm1570
        %v1572 = vsel %vm1571, %v1564, %v1568
        %v1573 = vand.u32 2147483647, %v1563
        %vm1574 = vcmp.eq.f32.partialorder %v1573, 8.507059e+37
        %v1575 = vand.u32 %v1563, 2147483648
        %v1576 = vor.u32 1.1754944e-38, %v1575
        %v1577 = vsel %vm1574, %v1576, %v1572
        %v1578 = vmul.f32 %v1553, %v1577
        %v1579 = vmin.f32 %v1578, 1.0
        %v1580 = vmax.f32 %v1579, -1.0
        %v1581 = vmul.f32 %v1534, %v1534
        %v1582 = vmin.f32 16.0, %v1581
        %v1583 = vmul.f32 %v1582, 2.1237322e-06
        %v1584 = vadd.f32 %v1583, 0.00028619796
        %v1585 = vmul.f32 %v1582, %v1584
        %v1586 = vadd.f32 %v1585, 0.0036580483
        %v1587 = vmul.f32 %v1582, %v1586
        %v1588 = vadd.f32 %v1587, 0.05243302
        %v1589 = vmul.f32 %v1582, %v1588
        %v1590 = vadd.f32 %v1589, 0.18741608
        %v1591 = vmul.f32 %v1582, %v1590
        %v1592 = vadd.f32 %v1591, 1.1283791
        %v1593 = vmul.f32 %v1534, %v1592
        %v1594 = vmul.f32 %v1582, 3.8918573e-05
        %v1595 = vadd.f32 %v1594, 0.001143296
        %v1596 = vmul.f32 %v1582, %v1595
        %v1597 = vadd.f32 %v1596, 0.014752088
        %v1598 = vmul.f32 %v1582, %v1597
        %v1599 = vadd.f32 %v1598, 0.112945676
        %v1600 = vmul.f32 %v1582, %v1599
        %v1601 = vadd.f32 %v1600, 0.4994258
        %v1602 = vmul.f32 %v1582, %v1601
        %v1603 = vadd.f32 %v1602, 1.0
        %v1604 = vrcp.pop %v1603
        %v1605 = vmul.f32 %v1603, %v1604
        %v1606 = vsub.f32 1.0, %v1605
        %v1607 = vmul.f32 %v1604, %v1606
        %v1608 = vadd.f32 %v1604, %v1607
        %vm1609 = vweird.f32 %v1603
        %vm1610 = vweird.f32 %v1604
        %vm1611 = vmor %vm1609, %vm1610
        %v1612 = vsel %vm1611, %v1604, %v1608
        %v1613 = vand.u32 2147483647, %v1603
        %vm1614 = vcmp.eq.f32.partialorder %v1613, 8.507059e+37
        %v1615 = vand.u32 %v1603, 2147483648
        %v1616 = vor.u32 1.1754944e-38, %v1615
        %v1617 = vsel %vm1614, %v1616, %v1612
        %v1618 = vmul.f32 %v1593, %v1617
        %v1619 = vmin.f32 %v1618, 1.0
        %v1620 = vmax.f32 %v1619, -1.0
        %v1621 = vmul.f32 %v1535, %v1535
        %v1622 = vmin.f32 16.0, %v1621
        %v1623 = vmul.f32 %v1622, 2.1237322e-06
        %v1624 = vadd.f32 %v1623, 0.00028619796
        %v1625 = vmul.f32 %v1622, %v1624
        %v1626 = vadd.f32 %v1625, 0.0036580483
        %v1627 = vmul.f32 %v1622, %v1626
        %v1628 = vadd.f32 %v1627, 0.05243302
        %v1629 = vmul.f32 %v1622, %v1628
        %v1630 = vadd.f32 %v1629, 0.18741608
        %v1631 = vmul.f32 %v1622, %v1630
        %v1632 = vadd.f32 %v1631, 1.1283791
        %v1633 = vmul.f32 %v1535, %v1632
        %v1634 = vmul.f32 %v1622, 3.8918573e-05
        %v1635 = vadd.f32 %v1634, 0.001143296
        %v1636 = vmul.f32 %v1622, %v1635
        %v1637 = vadd.f32 %v1636, 0.014752088
        %v1638 = vmul.f32 %v1622, %v1637
        %v1639 = vadd.f32 %v1638, 0.112945676
        %v1640 = vmul.f32 %v1622, %v1639
        %v1641 = vadd.f32 %v1640, 0.4994258
        %v1642 = vmul.f32 %v1622, %v1641
        %v1643 = vadd.f32 %v1642, 1.0
        %v1644 = vrcp.pop %v1643
        %v1645 = vmul.f32 %v1643, %v1644
        %v1646 = vsub.f32 1.0, %v1645
        %v1647 = vmul.f32 %v1644, %v1646
        %v1648 = vadd.f32 %v1644, %v1647
        %vm1649 = vweird.f32 %v1643
        %vm1650 = vweird.f32 %v1644
        %vm1651 = vmor %vm1649, %vm1650
        %v1652 = vsel %vm1651, %v1644, %v1648
        %v1653 = vand.u32 2147483647, %v1643
        %vm1654 = vcmp.eq.f32.partialorder %v1653, 8.507059e+37
        %v1655 = vand.u32 %v1643, 2147483648
        %v1656 = vor.u32 1.1754944e-38, %v1655
        %v1657 = vsel %vm1654, %v1656, %v1652
        %v1658 = vmul.f32 %v1633, %v1657
        %v1659 = vmin.f32 %v1658, 1.0
        %v1660 = vmax.f32 %v1659, -1.0
        %v1661 = vmul.f32 %v1536, %v1536
        %v1662 = vmin.f32 16.0, %v1661
        %v1663 = vmul.f32 %v1662, 2.1237322e-06
        %v1664 = vadd.f32 %v1663, 0.00028619796
        %v1665 = vmul.f32 %v1662, %v1664
        %v1666 = vadd.f32 %v1665, 0.0036580483
        %v1667 = vmul.f32 %v1662, %v1666
        %v1668 = vadd.f32 %v1667, 0.05243302
        %v1669 = vmul.f32 %v1662, %v1668
        %v1670 = vadd.f32 %v1669, 0.18741608
        %v1671 = vmul.f32 %v1662, %v1670
        %v1672 = vadd.f32 %v1671, 1.1283791
        %v1673 = vmul.f32 %v1536, %v1672
        %v1674 = vmul.f32 %v1662, 3.8918573e-05
        %v1675 = vadd.f32 %v1674, 0.001143296
        %v1676 = vmul.f32 %v1662, %v1675
        %v1677 = vadd.f32 %v1676, 0.014752088
        %v1678 = vmul.f32 %v1662, %v1677
        %v1679 = vadd.f32 %v1678, 0.112945676
        %v1680 = vmul.f32 %v1662, %v1679
        %v1681 = vadd.f32 %v1680, 0.4994258
        %v1682 = vmul.f32 %v1662, %v1681
        %v1683 = vadd.f32 %v1682, 1.0
        %v1684 = vrcp.pop %v1683
        %v1685 = vmul.f32 %v1683, %v1684
        %v1686 = vsub.f32 1.0, %v1685
        %v1687 = vmul.f32 %v1684, %v1686
        %v1688 = vadd.f32 %v1684, %v1687
        %vm1689 = vweird.f32 %v1683
        %vm1690 = vweird.f32 %v1684
        %vm1691 = vmor %vm1689, %vm1690
        %v1692 = vsel %vm1691, %v1684, %v1688
        %v1693 = vand.u32 2147483647, %v1683
        %vm1694 = vcmp.eq.f32.partialorder %v1693, 8.507059e+37
        %v1695 = vand.u32 %v1683, 2147483648
        %v1696 = vor.u32 1.1754944e-38, %v1695
        %v1697 = vsel %vm1694, %v1696, %v1692
        %v1698 = vmul.f32 %v1673, %v1697
        %v1699 = vmin.f32 %v1698, 1.0
        %v1700 = vmax.f32 %v1699, -1.0
        %v1701 = vmul.f32 %v1537, %v1537
        %v1702 = vmin.f32 16.0, %v1701
        %v1703 = vmul.f32 %v1702, 2.1237322e-06
        %v1704 = vadd.f32 %v1703, 0.00028619796
        %v1705 = vmul.f32 %v1702, %v1704
        %v1706 = vadd.f32 %v1705, 0.0036580483
        %v1707 = vmul.f32 %v1702, %v1706
        %v1708 = vadd.f32 %v1707, 0.05243302
        %v1709 = vmul.f32 %v1702, %v1708
        %v1710 = vadd.f32 %v1709, 0.18741608
        %v1711 = vmul.f32 %v1702, %v1710
        %v1712 = vadd.f32 %v1711, 1.1283791
        %v1713 = vmul.f32 %v1537, %v1712
        %v1714 = vmul.f32 %v1702, 3.8918573e-05
        %v1715 = vadd.f32 %v1714, 0.001143296
        %v1716 = vmul.f32 %v1702, %v1715
        %v1717 = vadd.f32 %v1716, 0.014752088
        %v1718 = vmul.f32 %v1702, %v1717
        %v1719 = vadd.f32 %v1718, 0.112945676
        %v1720 = vmul.f32 %v1702, %v1719
        %v1721 = vadd.f32 %v1720, 0.4994258
        %v1722 = vmul.f32 %v1702, %v1721
        %v1723 = vadd.f32 %v1722, 1.0
        %v1724 = vrcp.pop %v1723
        %v1725 = vmul.f32 %v1723, %v1724
        %v1726 = vsub.f32 1.0, %v1725
        %v1727 = vmul.f32 %v1724, %v1726
        %v1728 = vadd.f32 %v1724, %v1727
        %vm1729 = vweird.f32 %v1723
        %vm1730 = vweird.f32 %v1724
        %vm1731 = vmor %vm1729, %vm1730
        %v1732 = vsel %vm1731, %v1724, %v1728
        %v1733 = vand.u32 2147483647, %v1723
        %vm1734 = vcmp.eq.f32.partialorder %v1733, 8.507059e+37
        %v1735 = vand.u32 %v1723, 2147483648
        %v1736 = vor.u32 1.1754944e-38, %v1735
        %v1737 = vsel %vm1734, %v1736, %v1732
        %v1738 = vmul.f32 %v1713, %v1737
        %v1739 = vmin.f32 %v1738, 1.0
        %v1740 = vmax.f32 %v1739, -1.0
        %v1741 = vmul.f32 %v1538, %v1538
        %v1742 = vmin.f32 16.0, %v1741
        %v1743 = vmul.f32 %v1742, 2.1237322e-06
        %v1744 = vadd.f32 %v1743, 0.00028619796
        %v1745 = vmul.f32 %v1742, %v1744
        %v1746 = vadd.f32 %v1745, 0.0036580483
        %v1747 = vmul.f32 %v1742, %v1746
        %v1748 = vadd.f32 %v1747, 0.05243302
        %v1749 = vmul.f32 %v1742, %v1748
        %v1750 = vadd.f32 %v1749, 0.18741608
        %v1751 = vmul.f32 %v1742, %v1750
        %v1752 = vadd.f32 %v1751, 1.1283791
        %v1753 = vmul.f32 %v1538, %v1752
        %v1754 = vmul.f32 %v1742, 3.8918573e-05
        %v1755 = vadd.f32 %v1754, 0.001143296
        %v1756 = vmul.f32 %v1742, %v1755
        %v1757 = vadd.f32 %v1756, 0.014752088
        %v1758 = vmul.f32 %v1742, %v1757
        %v1759 = vadd.f32 %v1758, 0.112945676
        %v1760 = vmul.f32 %v1742, %v1759
        %v1761 = vadd.f32 %v1760, 0.4994258
        %v1762 = vmul.f32 %v1742, %v1761
        %v1763 = vadd.f32 %v1762, 1.0
        %v1764 = vrcp.pop %v1763
        %v1765 = vmul.f32 %v1763, %v1764
        %v1766 = vsub.f32 1.0, %v1765
        %v1767 = vmul.f32 %v1764, %v1766
        %v1768 = vadd.f32 %v1764, %v1767
        %vm1769 = vweird.f32 %v1763
        %vm1770 = vweird.f32 %v1764
        %vm1771 = vmor %vm1769, %vm1770
        %v1772 = vsel %vm1771, %v1764, %v1768
        %v1773 = vand.u32 2147483647, %v1763
        %vm1774 = vcmp.eq.f32.partialorder %v1773, 8.507059e+37
        %v1775 = vand.u32 %v1763, 2147483648
        %v1776 = vor.u32 1.1754944e-38, %v1775
        %v1777 = vsel %vm1774, %v1776, %v1772
        %v1778 = vmul.f32 %v1753, %v1777
        %v1779 = vmin.f32 %v1778, 1.0
        %v1780 = vmax.f32 %v1779, -1.0
        %v1781 = vmul.f32 %v1539, %v1539
        %v1782 = vmin.f32 16.0, %v1781
        %v1783 = vmul.f32 %v1782, 2.1237322e-06
        %v1784 = vadd.f32 %v1783, 0.00028619796
        %v1785 = vmul.f32 %v1782, %v1784
        %v1786 = vadd.f32 %v1785, 0.0036580483
        %v1787 = vmul.f32 %v1782, %v1786
        %v1788 = vadd.f32 %v1787, 0.05243302
        %v1789 = vmul.f32 %v1782, %v1788
        %v1790 = vadd.f32 %v1789, 0.18741608
        %v1791 = vmul.f32 %v1782, %v1790
        %v1792 = vadd.f32 %v1791, 1.1283791
        %v1793 = vmul.f32 %v1539, %v1792
        %v1794 = vmul.f32 %v1782, 3.8918573e-05
        %v1795 = vadd.f32 %v1794, 0.001143296
        %v1796 = vmul.f32 %v1782, %v1795
        %v1797 = vadd.f32 %v1796, 0.014752088
        %v1798 = vmul.f32 %v1782, %v1797
        %v1799 = vadd.f32 %v1798, 0.112945676
        %v1800 = vmul.f32 %v1782, %v1799
        %v1801 = vadd.f32 %v1800, 0.4994258
        %v1802 = vmul.f32 %v1782, %v1801
        %v1803 = vadd.f32 %v1802, 1.0
        %v1804 = vrcp.pop %v1803
        %v1805 = vmul.f32 %v1803, %v1804
        %v1806 = vsub.f32 1.0, %v1805
        %v1807 = vmul.f32 %v1804, %v1806
        %v1808 = vadd.f32 %v1804, %v1807
        %vm1809 = vweird.f32 %v1803
        %vm1810 = vweird.f32 %v1804
        %vm1811 = vmor %vm1809, %vm1810
        %v1812 = vsel %vm1811, %v1804, %v1808
        %v1813 = vand.u32 2147483647, %v1803
        %vm1814 = vcmp.eq.f32.partialorder %v1813, 8.507059e+37
        %v1815 = vand.u32 %v1803, 2147483648
        %v1816 = vor.u32 1.1754944e-38, %v1815
        %v1817 = vsel %vm1814, %v1816, %v1812
        %v1818 = vmul.f32 %v1793, %v1817
        %v1819 = vmin.f32 %v1818, 1.0
        %v1820 = vmax.f32 %v1819, -1.0
        %v1821 = vmul.f32 %v1540, %v1540
        %v1822 = vmin.f32 16.0, %v1821
        %v1823 = vmul.f32 %v1822, 2.1237322e-06
        %v1824 = vadd.f32 %v1823, 0.00028619796
        %v1825 = vmul.f32 %v1822, %v1824
        %v1826 = vadd.f32 %v1825, 0.0036580483
        %v1827 = vmul.f32 %v1822, %v1826
        %v1828 = vadd.f32 %v1827, 0.05243302
        %v1829 = vmul.f32 %v1822, %v1828
        %v1830 = vadd.f32 %v1829, 0.18741608
        %v1831 = vmul.f32 %v1822, %v1830
        %v1832 = vadd.f32 %v1831, 1.1283791
        %v1833 = vmul.f32 %v1540, %v1832
        %v1834 = vmul.f32 %v1822, 3.8918573e-05
        %v1835 = vadd.f32 %v1834, 0.001143296
        %v1836 = vmul.f32 %v1822, %v1835
        %v1837 = vadd.f32 %v1836, 0.014752088
        %v1838 = vmul.f32 %v1822, %v1837
        %v1839 = vadd.f32 %v1838, 0.112945676
        %v1840 = vmul.f32 %v1822, %v1839
        %v1841 = vadd.f32 %v1840, 0.4994258
        %v1842 = vmul.f32 %v1822, %v1841
        %v1843 = vadd.f32 %v1842, 1.0
        %v1844 = vrcp.pop %v1843
        %v1845 = vmul.f32 %v1843, %v1844
        %v1846 = vsub.f32 1.0, %v1845
        %v1847 = vmul.f32 %v1844, %v1846
        %v1848 = vadd.f32 %v1844, %v1847
        %vm1849 = vweird.f32 %v1843
        %vm1850 = vweird.f32 %v1844
        %vm1851 = vmor %vm1849, %vm1850
        %v1852 = vsel %vm1851, %v1844, %v1848
        %v1853 = vand.u32 2147483647, %v1843
        %vm1854 = vcmp.eq.f32.partialorder %v1853, 8.507059e+37
        %v1855 = vand.u32 %v1843, 2147483648
        %v1856 = vor.u32 1.1754944e-38, %v1855
        %v1857 = vsel %vm1854, %v1856, %v1852
        %v1858 = vmul.f32 %v1833, %v1857
        %v1859 = vmin.f32 %v1858, 1.0
        %v1860 = vmax.f32 %v1859, -1.0
        %v1861 = vadd.f32 %v1580, 1.0
        %v1862 = vadd.f32 %v1620, 1.0
        %v1863 = vadd.f32 %v1660, 1.0
        %v1864 = vadd.f32 %v1700, 1.0
        %v1865 = vadd.f32 %v1740, 1.0
        %v1866 = vadd.f32 %v1780, 1.0
        %v1867 = vadd.f32 %v1820, 1.0
        %v1868 = vadd.f32 %v1860, 1.0
        %v1869 = vmul.f32 %v1525, %v1861
        %v1870 = vmul.f32 %v1526, %v1862
        %v1871 = vmul.f32 %v1527, %v1863
        %v1872 = vmul.f32 %v1528, %v1864
        %v1873 = vmul.f32 %v1529, %v1865
        %v1874 = vmul.f32 %v1530, %v1866
        %v1875 = vmul.f32 %v1531, %v1867
        %v1876 = vmul.f32 %v1532, %v1868
        %v1877 = vld [vmem:[#allocation2] sm:$0xff]
        %v1878 = vld [vmem:[#allocation2 + $0x8] sm:$0xff]
        %v1879 = vld [vmem:[#allocation2 + $0x10] sm:$0xff]
        %v1880 = vld [vmem:[#allocation2 + $0x18] sm:$0xff]
        %v1881 = vld [vmem:[#allocation2 + $0x20] sm:$0xff]
        %v1882 = vld [vmem:[#allocation2 + $0x28] sm:$0xff]
        %v1883 = vld [vmem:[#allocation2 + $0x30] sm:$0xff]
        %v1884 = vld [vmem:[#allocation2 + $0x38] sm:$0xff]
        %v1885 = vld [vmem:[#allocation2 + $0x40] sm:$0xff]
        %v1886 = vld [vmem:[#allocation2 + $0x48] sm:$0xff]
        %v1887 = vld [vmem:[#allocation2 + $0x50] sm:$0xff]
        %v1888 = vld [vmem:[#allocation2 + $0x58] sm:$0xff]
        %v1889 = vld [vmem:[#allocation2 + $0x60] sm:$0xff]
        %v1890 = vld [vmem:[#allocation2 + $0x68] sm:$0xff]
        %v1891 = vld [vmem:[#allocation2 + $0x70] sm:$0xff]
        %v1892 = vld [vmem:[#allocation2 + $0x78] sm:$0xff]
        %v1893 = vld [vmem:[%s10] sm:$0x1]
        %v1895 = vperm.slane %v1893, 0
        %1897 = vmatpush.msra.mxu0 %v1892
        %1898 = vmatpush.msra.mxu0 %v1891
        %1899 = vmatpush.msra.mxu0 %v1890
        %1900 = vmatpush.msra.mxu0 %v1889
        %1901 = vmatpush.msra.mxu0 %v1888
        %1902 = vmatpush.msra.mxu0 %v1887
        %1903 = vmatpush.msra.mxu0 %v1886
        %1904 = vmatpush.msra.mxu0 %v1885
        %1905 = vmatpush.msra.mxu0 %v1884
        %1906 = vmatpush.msra.mxu0 %v1883
        %1907 = vmatpush.msra.mxu0 %v1882
        %1908 = vmatpush.msra.mxu0 %v1881
        %1909 = vmatpush.msra.mxu0 %v1880
        %1910 = vmatpush.msra.mxu0 %v1879
        %1911 = vmatpush.msra.mxu0 %v1878
        %1912 = vmatpush.msra.mxu0 %v1877
        %1913 = vmatmul.f32.gmra.mxu0 %v1869
        %v1914 = vpop.f32.mrf.mxu0
        %v1915 = vadd.f32 %v1895, %v1914
        %1916 = vmatmul.f32.gmra.mxu0 %v1870
        %v1917 = vpop.f32.mrf.mxu0
        %v1918 = vadd.f32 %v1895, %v1917
        %1919 = vmatmul.f32.gmra.mxu0 %v1871
        %v1920 = vpop.f32.mrf.mxu0
        %v1921 = vadd.f32 %v1895, %v1920
        %1922 = vmatmul.f32.gmra.mxu0 %v1872
        %v1923 = vpop.f32.mrf.mxu0
        %v1924 = vadd.f32 %v1895, %v1923
        %1925 = vmatmul.f32.gmra.mxu0 %v1873
        %v1926 = vpop.f32.mrf.mxu0
        %v1927 = vadd.f32 %v1895, %v1926
        %1928 = vmatmul.f32.gmra.mxu0 %v1874
        %v1929 = vpop.f32.mrf.mxu0
        %v1930 = vadd.f32 %v1895, %v1929
        %1931 = vmatmul.f32.gmra.mxu0 %v1875
        %v1932 = vpop.f32.mrf.mxu0
        %v1933 = vadd.f32 %v1895, %v1932
        %1934 = vmatmul.f32.gmra.mxu0 %v1876
        %v1935 = vpop.f32.mrf.mxu0
        %v1936 = vadd.f32 %v1895, %v1935
        %1937 = vdwg.mxu0
        %1938 = vst [vmem:[%s397] sm:$0xff] %v1915
        %1939 = vst [vmem:[%s397 + $0x8] sm:$0xff] %v1918
        %1940 = vst [vmem:[%s397 + $0x10] sm:$0xff] %v1921
        %1941 = vst [vmem:[%s397 + $0x18] sm:$0xff] %v1924
        %1942 = vst [vmem:[%s397 + $0x20] sm:$0xff] %v1927
        %1943 = vst [vmem:[%s397 + $0x28] sm:$0xff] %v1930
        %1944 = vst [vmem:[%s397 + $0x30] sm:$0xff] %v1933
        %1945 = vst [vmem:[%s397 + $0x38] sm:$0xff] %v1936
        %s1946 = sand.u32 %s270, 1
        %s1947 = scalar_lea.sflag [#allocation4], %s1946
        %s1948 = sand.u32 %s270, 1
        %s1949 = smul.addr %s1948, 64
        %s1950 = scalar_lea.vmem [#allocation5], %s1949
        // Predicated region
        $region69: #{tpu_custom_call.1} parent=63 // pred_check
          %p1951 = pneg %p280
        $region70: #{tpu_custom_call.1} parent=63 // pred_check_branch
          %1953 = sbr.rel (%p1951) target = $region72
        $region71: #{tpu_custom_call.1} parent=63 // pred_region
          %s1954 = smul.u32 8, %s26
          %1956 = vsyncadd %s1947, 0
          %s1957 = smul.addr %s1954, 8
          %s1958 = scalar_lea.hbm %s11, %s1957
          %s1959 = sshll.u32 %s1950, 4
          %s1960 = int_to_ptr.vmem [resolvable:$true] %s1959
          %s1961 = sshll.u32 %s1958, 4
          %s1962 = int_to_ptr.hbm [resolvable:$true] %s1961
          %1967 = dma.vmem_to_hbm [thread:$0]  %s1960, 1024, %s1962, %s1947, 128, 128, 8
        $region72: #{tpu_custom_call.1} parent=63 // pred_fallthru
          _
      $region64: #{tpu_custom_call.1} parent=5 // pred_fallthru
        _
      %p1968 = scmp.le.s32.totalorder 2, %s21
      // Predicated region
      $region73: #{tpu_custom_call.1} parent=5 // pred_check
        %p1969 = pneg %p1968
      $region74: #{tpu_custom_call.1} parent=5 // pred_check_branch
        %1971 = sbr.rel (%p1969) target = $region76
      $region75: #{tpu_custom_call.1} parent=5 // pred_region
        %s1972 = ssub.s32 %s21, 2
        // Predicated region
        $region77: #{tpu_custom_call.1} parent=75 // pred_check
          %p1973 = pneg %p286
        $region78: #{tpu_custom_call.1} parent=75 // pred_check_branch
          %1975 = sbr.rel (%p1973) target = $region80
        $region79: #{tpu_custom_call.1} parent=75 // pred_region
          %s1976 = sand.u32 %s271, 1
          %s1977 = scalar_lea.sflag [#allocation4], %s1976
          %s1978 = sand.u32 %s271, 1
          %s1979 = smul.addr %s1978, 64
          %s1980 = scalar_lea.vmem [#allocation5], %s1979
          %1982 = dma.done %s1977, 1024
        $region80: #{tpu_custom_call.1} parent=75 // pred_fallthru
          _
      $region76: #{tpu_custom_call.1} parent=5 // pred_fallthru
        _
    $region6: #{tpu_custom_call.1} parent=1 // loop_footer
      %s25 = sadd.s32 1, %s21
    $region7: #{tpu_custom_call.1} parent=1 // loop_footer_branch
      %20 = sbr.rel target = $region3
    $region8: #{tpu_custom_call.1} parent=1 // loop_exit
      _
    %1983 = vsyncpa [#allocation3], 1
    %s1984 = scalar_lea.sflag [#allocation3], 1
    %1985 = vsyncpa %s1984, 1
    %1986 = vsyncpa [#allocation4], 1
    %s1987 = scalar_lea.sflag [#allocation4], 1
    %1988 = vsyncpa %s1987, 1

</llo_original>
